<compile_context>
chip_gen: v7x
topology: tpu7x:2x2x1
jax: 0.10.0
libtpu: 0.0.40
codegen_flags: <defaults>
</compile_context>

<pallas_src>
import functools

import jax
import jax.numpy as jnp
from jax.experimental import pallas as pl
from jax.experimental.pallas import tpu as pltpu

EPS = 1e-5
NEG_SLOPE = 0.3


def _lrelu(v):
    return jnp.where(v >= 0, v, NEG_SLOPE * v)


# ----------------------------------------------------------------------------
# Pallas kernels: fused REBlock forward for one lane-packed batch tile.
# ----------------------------------------------------------------------------
def reblock_kernel_fused(x_ref, w1_ref, b1_ref, w2_ref, b2_ref, w3_ref, b3_ref,
                         o_ref):
    """Layer-2 fused as one 14H x 14H matmul (v6e / v7x: one 256-wide tile)."""
    x = x_ref[...]                                               # (2H, LT) bf16

    h = jnp.dot(w1_ref[...], x, preferred_element_type=jnp.float32)
    h = _lrelu(h + b1_ref[...]).astype(jnp.bfloat16)             # (14H, LT)

    h = jnp.dot(w2_ref[...], h, preferred_element_type=jnp.float32)
    h = _lrelu(h + b2_ref[...]).astype(jnp.bfloat16)             # (14H, LT)

    out = jnp.dot(w3_ref[...], h, preferred_element_type=jnp.float32)
    o_ref[...] = _lrelu(out + b3_ref[...]).astype(jnp.bfloat16)  # (2H, LT) bf16


def reblock_kernel_split(x_ref, w1_ref, b1_ref, w2a_ref, b2a_ref, w2b_ref,
                         b2b_ref, w3a_ref, w3b_ref, b3_ref, o_ref):
    """v5e variant: layer 2 as two 7H x 7H matmuls (matches 128x128 MXU tiles,
    skips the structural zeros of the block-diagonal form)."""
    x = x_ref[...]                                               # (2H, LT) bf16

    h = jnp.dot(w1_ref[...], x, preferred_element_type=jnp.float32)
    h = _lrelu(h + b1_ref[...]).astype(jnp.bfloat16)             # (14H, LT)

    n = w2a_ref.shape[0]                                         # 7H
    ha = jnp.dot(w2a_ref[...], h[:n], preferred_element_type=jnp.float32)
    hb = jnp.dot(w2b_ref[...], h[n:], preferred_element_type=jnp.float32)
    ha = _lrelu(ha + b2a_ref[...]).astype(jnp.bfloat16)          # (7H, LT)
    hb = _lrelu(hb + b2b_ref[...]).astype(jnp.bfloat16)          # (7H, LT)

    out = (jnp.dot(w3a_ref[...], ha, preferred_element_type=jnp.float32)
           + jnp.dot(w3b_ref[...], hb, preferred_element_type=jnp.float32))
    o_ref[...] = _lrelu(out + b3_ref[...]).astype(jnp.bfloat16)  # (2H, LT) bf16


# ----------------------------------------------------------------------------
# Parameter setup glue (plain JAX): Toeplitz conv matrices, BN folding, fusion.
# ----------------------------------------------------------------------------
def toeplitz_1d(w1d, H):
    """H x H 'same' cross-correlation matrix for a length-K kernel along H."""
    K = w1d.shape[0]
    p = (K - 1) // 2
    i = jnp.arange(H)[:, None]
    j = jnp.arange(H)[None, :]
    kidx = j - i + p
    valid = (kidx >= 0) & (kidx < K)
    return jnp.where(valid, w1d[jnp.clip(kidx, 0, K - 1)], 0.0).astype(jnp.float32)


def conv_matrix(w, H):
    """(Cout, Cin, K) conv-along-H weights -> (Cout*H, Cin*H) matrix."""
    T = jax.vmap(jax.vmap(lambda v: toeplitz_1d(v, H)))(w)   # (Cout, Cin, H, H)
    cout, cin = w.shape[0], w.shape[1]
    return T.transpose(0, 2, 1, 3).reshape(cout * H, cin * H)


def fold_bn(p):
    s = p["gamma"] / jnp.sqrt(p["var"] + EPS)
    b = p["beta"] - p["mean"] * s
    return s, b


def init_convbn(key, cin, cout, k):
    k1, k2, k3, k4, k5 = jax.random.split(key, 5)
    w = jax.random.normal(k1, (cout, cin, k), jnp.float32) / jnp.sqrt(cin * k)
    return dict(
        w=w,
        gamma=1.0 + 0.1 * jax.random.normal(k2, (cout,), jnp.float32),
        beta=0.1 * jax.random.normal(k3, (cout,), jnp.float32),
        mean=0.1 * jax.random.normal(k4, (cout,), jnp.float32),
        var=1.0 + 0.1 * jax.random.uniform(k5, (cout,), jnp.float32),
    )


def build_params(key):
    ks = jax.random.split(key, 7)
    return dict(
        p1=[init_convbn(ks[0], 2, 7, 7),
            init_convbn(ks[1], 7, 7, 5),
            init_convbn(ks[2], 7, 2, 5)],
        p2=[init_convbn(ks[3], 2, 7, 11),
            init_convbn(ks[4], 7, 7, 9),
            init_convbn(ks[5], 7, 2, 9)],
        f=init_convbn(ks[6], 4, 2, 1),
    )


def build_kernel_operands(params, H, *, split_layer2=False):
    """Fold AvgPool + convs + BN + concat + 1x1 ConvBN into matmul operands."""
    pool1d = toeplitz_1d(jnp.full((3,), 1.0 / 3.0, jnp.float32), H)  # AvgPool[3,1]
    pool2 = jnp.kron(jnp.eye(2, dtype=jnp.float32), pool1d)          # (2H, 2H)

    def path_mats(layers):
        mats, biases = [], []
        for idx, lyr in enumerate(layers):
            s, b = fold_bn(lyr)
            M = conv_matrix(lyr["w"], H)
            if idx == 0:                      # pool precedes the first conv
                M = M @ pool2
            mats.append(jnp.repeat(s, H)[:, None] * M)
            biases.append(jnp.repeat(b, H)[:, None])
        return mats, biases

    (A1, A2, A3), (ab1, ab2, ab3) = path_mats(params["p1"])
    (B1, B2, B3), (bb1, bb2, bb3) = path_mats(params["p2"])

    # Final 1x1 ConvBN as a (2H, 4H) matrix split over the concat halves.
    sf, bcf = fold_bn(params["f"])
    wf = params["f"]["w"][:, :, 0]                                   # (2, 4)
    Mf = jnp.kron(sf[:, None] * wf, jnp.eye(H, dtype=jnp.float32))   # (2H, 4H)
    F1, F2 = Mf[:, :2 * H], Mf[:, 2 * H:]
    fb = jnp.repeat(bcf, H)[:, None]

    # Layer 1: both paths share one matmul (no structural zeros).
    W1 = jnp.concatenate([A1, B1], axis=0)                           # (14H, 2H)
    b1 = jnp.concatenate([ab1, bb1], axis=0)

    # Layer 3 fused with concat + final 1x1 ConvBN.
    W3a, W3b = F1 @ A3, F2 @ B3                                      # (2H, 7H) each
    b3 = F1 @ ab3 + F2 @ bb3 + fb                                    # (2H, 1)

    bf = lambda m: m.astype(jnp.bfloat16)   # bf16 weights; f32 MXU accumulation
    if split_layer2:
        # v5e: two dense 7H x 7H matmuls (no zero-padding waste on 128x128 MXU).
        return (bf(W1), b1, bf(A2), ab2, bf(B2), bb2, bf(W3a), bf(W3b), b3)

    # v6e / v7x: one block-diagonal 14H x 14H matmul (fits one 256-wide tile).
    n = 7 * H
    W2 = jnp.zeros((2 * n, 2 * n), jnp.float32)
    W2 = W2.at[:n, :n].set(A2).at[n:, n:].set(B2)                    # (14H, 14H)
    b2 = jnp.concatenate([ab2, bb2], axis=0)
    W3 = jnp.concatenate([W3a, W3b], axis=1)                         # (2H, 14H)
    return (bf(W1), b1, bf(W2), b2, bf(W3), b3)


def _is_v5e():
    try:
        kind = jax.devices()[0].device_kind.lower()
    except Exception:
        return False
    return ("v5e" in kind) or ("v5 lite" in kind) or ("v5lite" in kind)


def choose_batch_tile(B, W, target_lanes=1024):
    """Largest batch tile giving lane-dense (128-multiple) tiles of at most
    `target_lanes` lanes while keeping >= 2 grid steps (v7x megacore)."""
    best = None
    for bt in range(1, B + 1):
        if B % bt:
            continue
        lanes = bt * W
        if lanes > target_lanes:
            break
        if lanes % 128:
            continue
        if B // bt >= 2:
            best = bt
    if best is None:
        for bt in range(1, B + 1):
            if B % bt == 0 and (bt * W) % 128 == 0 and bt * W <= target_lanes:
                best = bt
    return best if best is not None else B


# ----------------------------------------------------------------------------
# Packed entry point: (C*H, B*W) bf16 in / bf16 out, weights VMEM-resident.
# Producers/consumers that keep this layout avoid the host-side transposes.
# ----------------------------------------------------------------------------
@functools.partial(jax.jit, static_argnames=("lane_tile", "split_layer2"))
def reblock_forward_packed(x_packed, *operands, lane_tile, split_layer2=False):
    rows, total_lanes = x_packed.shape                 # rows = 2H
    assert total_lanes % lane_tile == 0, "B*W must divide into lane tiles"
    assert lane_tile % 128 == 0, "lane tile must be a multiple of 128 (dense vst)"
    grid = (total_lanes // lane_tile,)
    kernel = reblock_kernel_split if split_layer2 else reblock_kernel_fused

    # Advisory cost estimate so XLA schedules surrounding ops sensibly.
    rows14 = operands[0].shape[0]                      # 14H
    l2_flops = 4 * (rows14 // 2) ** 2 if split_layer2 else 2 * rows14 * rows14
    flops = total_lanes * (2 * rows14 * rows + l2_flops + 2 * rows * rows14)
    bytes_accessed = (x_packed.size * x_packed.dtype.itemsize
                      + rows * total_lanes * 2
                      + sum(int(o.size) * o.dtype.itemsize for o in operands))

    def resident(op):   # constant block index -> stays VMEM-resident across steps
        return pl.BlockSpec(op.shape, lambda i: (0, 0))

    return pl.pallas_call(
        kernel,
        out_shape=jax.ShapeDtypeStruct((rows, total_lanes), jnp.bfloat16),
        grid=grid,
        in_specs=[pl.BlockSpec((rows, lane_tile), lambda i: (0, i))]
                 + [resident(op) for op in operands],
        out_specs=pl.BlockSpec((rows, lane_tile), lambda i: (0, i)),
        compiler_params=pltpu.CompilerParams(
            dimension_semantics=("parallel",),
            vmem_limit_bytes=32 * 1024 * 1024),
        cost_estimate=pl.CostEstimate(flops=int(flops), transcendentals=0,
                                      bytes_accessed=int(bytes_accessed)),
    )(x_packed, *operands)


# ----------------------------------------------------------------------------
# NCHW wrapper (drop-in for the PyTorch module's (B, 2, H, W) interface).
# ----------------------------------------------------------------------------
@functools.partial(jax.jit, static_argnames=("batch_tile", "split_layer2"))
def reblock_forward(x, operands, *, batch_tile=None, split_layer2=False):
    B, C, H, W = x.shape
    assert C == 2
    if batch_tile is None:
        batch_tile = choose_batch_tile(B, W)
    # (B, C, H, W) -> (C*H, B*W): channel-major rows on sublanes, batch*width
    # packed densely on lanes.  (Production callers should stay in the packed
    # layout and call reblock_forward_packed directly.)
    xp = x.transpose(1, 2, 0, 3).reshape(C * H, B * W).astype(jnp.bfloat16)
    out = reblock_forward_packed(xp, *operands,
                                 lane_tile=batch_tile * W,
                                 split_layer2=split_layer2)
    return out.reshape(C, H, B, W).transpose(2, 0, 1, 3)


# ----------------------------------------------------------------------------
# Pure-JAX reference (mirrors the PyTorch forward, inference-mode BN, f32).
# ----------------------------------------------------------------------------
def ref_forward(x, params):
    def avgpool31(v):
        vp = jnp.pad(v, ((0, 0), (0, 0), (1, 1), (0, 0)))
        return (vp[:, :, :-2] + vp[:, :, 1:-1] + vp[:, :, 2:]) / 3.0

    def conv_h(v, w):
        K = w.shape[-1]
        p = (K - 1) // 2
        H = v.shape[2]
        vp = jnp.pad(v, ((0, 0), (0, 0), (p, p), (0, 0)))
        out = jnp.zeros((v.shape[0], w.shape[0], H, v.shape[3]), jnp.float32)
        for k in range(K):
            out = out + jnp.einsum("oi,bihw->bohw", w[:, :, k], vp[:, :, k:k + H, :])
        return out

    def bn(v, p):
        s = p["gamma"] / jnp.sqrt(p["var"] + EPS)
        b = p["beta"] - p["mean"] * s
        return v * s[None, :, None, None] + b[None, :, None, None]

    def path(v, layers):
        h = avgpool31(v)
        h = _lrelu(bn(conv_h(h, layers[0]["w"]), layers[0]))
        h = _lrelu(bn(conv_h(h, layers[1]["w"]), layers[1]))
        return bn(conv_h(h, layers[2]["w"]), layers[2])

    o1 = path(x, params["p1"])
    o2 = path(x, params["p2"])
    cat = jnp.concatenate([o1, o2], axis=1)
    return _lrelu(bn(conv_h(cat, params["f"]["w"]), params["f"]))


# ----------------------------------------------------------------------------
if __name__ == "__main__":
    key = jax.random.PRNGKey(0)
    k_param, k_x = jax.random.split(key)

    # B=64, W=16 -> lane tile auto-chosen as 32 images * 16 = 512 lanes/step,
    # 2 "parallel" grid steps (keeps both v7x TensorCores busy, lane-dense vst).
    B, C, H, W = 64, 2, 16, 16
    x = jax.random.normal(k_x, (B, C, H, W), jnp.float32)

    params = build_params(k_param)
    split_l2 = _is_v5e()   # split layer-2 block-diagonal only on v5e's 128x128 MXU
    operands = build_kernel_operands(params, H, split_layer2=split_l2)

    out = reblock_forward(x, operands, split_layer2=split_l2)
    out = jax.block_until_ready(out)

    ref = ref_forward(x, params)
    max_diff = float(jnp.max(jnp.abs(out.astype(jnp.float32) - ref)))
    assert out.shape == (B, 2, H, W), out.shape
    # bf16 operands + bf16 intermediates/output + f32 accumulation vs f32 ref.
    assert max_diff < 1e-1, f"mismatch vs reference: {max_diff}"

    print("KERNEL_OK")
</pallas_src>

<mosaic_0001>
module attributes {stable_mosaic.version = 11 : i64} {
  func.func @reblock_kernel_fused(%arg0: i32, %arg1: memref<32x512xbf16, #tpu.memory_space<vmem>>, %arg2: memref<224x32xbf16, #tpu.memory_space<vmem>>, %arg3: memref<224x1xf32, #tpu.memory_space<vmem>>, %arg4: memref<224x224xbf16, #tpu.memory_space<vmem>>, %arg5: memref<224x1xf32, #tpu.memory_space<vmem>>, %arg6: memref<32x224xbf16, #tpu.memory_space<vmem>>, %arg7: memref<32x1xf32, #tpu.memory_space<vmem>>, %arg8: memref<32x512xbf16, #tpu.memory_space<vmem>>) attributes {dimension_semantics = [#tpu.dimension_semantics<parallel>], iteration_bounds = array<i64: 2>, scalar_prefetch = 0 : i64, scratch_operands = 0 : i64, tpu.core_type = #tpu.core_type<tc>, window_params = [{transform_indices = @transform_0, window_bounds = array<i64: 32, 512>}, {pipeline_mode = #tpu.pipeline_mode<synchronous>, transform_indices = @transform_1, window_bounds = array<i64: 224, 32>}, {pipeline_mode = #tpu.pipeline_mode<synchronous>, transform_indices = @transform_2, window_bounds = array<i64: 224, 1>}, {pipeline_mode = #tpu.pipeline_mode<synchronous>, transform_indices = @transform_3, window_bounds = array<i64: 224, 224>}, {pipeline_mode = #tpu.pipeline_mode<synchronous>, transform_indices = @transform_4, window_bounds = array<i64: 224, 1>}, {pipeline_mode = #tpu.pipeline_mode<synchronous>, transform_indices = @transform_5, window_bounds = array<i64: 32, 224>}, {pipeline_mode = #tpu.pipeline_mode<synchronous>, transform_indices = @transform_6, window_bounds = array<i64: 32, 1>}, {transform_indices = @transform_7, window_bounds = array<i64: 32, 512>}]} {
    %c0 = arith.constant 0 : index
    %c0_0 = arith.constant 0 : index
    %0 = vector.load %arg1[%c0, %c0_0] : memref<32x512xbf16, #tpu.memory_space<vmem>>, vector<32x512xbf16>
    %c0_1 = arith.constant 0 : index
    %c0_2 = arith.constant 0 : index
    %1 = vector.load %arg2[%c0_1, %c0_2] : memref<224x32xbf16, #tpu.memory_space<vmem>>, vector<224x32xbf16>
    %cst = arith.constant dense<0.000000e+00> : vector<224x512xf32>
    %2 = tpu.matmul %1, %0, %cst {dimension_numbers = #tpu.dot_dimension_numbers<[1], [0], [0], [1], [0, 0, 1, 1], [], []>} : vector<224x32xbf16>, vector<32x512xbf16>, vector<224x512xf32> -> vector<224x512xf32>
    %c0_3 = arith.constant 0 : index
    %c0_4 = arith.constant 0 : index
    %3 = vector.load %arg3[%c0_3, %c0_4] : memref<224x1xf32, #tpu.memory_space<vmem>>, vector<224x1xf32>
    %4 = vector.broadcast %3 : vector<224x1xf32> to vector<224x512xf32>
    %5 = arith.addf %2, %4 : vector<224x512xf32>
    %cst_5 = arith.constant 0.000000e+00 : f32
    %6 = vector.broadcast %cst_5 : f32 to vector<224x512xf32>
    %7 = arith.cmpf oge, %5, %6 : vector<224x512xf32>
    %cst_6 = arith.constant 3.000000e-01 : f32
    %8 = vector.broadcast %cst_6 : f32 to vector<224x512xf32>
    %9 = arith.mulf %8, %5 : vector<224x512xf32>
    %10 = arith.select %7, %5, %9 : vector<224x512xi1>, vector<224x512xf32>
    %11 = arith.truncf %10 : vector<224x512xf32> to vector<224x512xbf16>
    %c0_7 = arith.constant 0 : index
    %c0_8 = arith.constant 0 : index
    %12 = vector.load %arg4[%c0_7, %c0_8] : memref<224x224xbf16, #tpu.memory_space<vmem>>, vector<224x224xbf16>
    %cst_9 = arith.constant dense<0.000000e+00> : vector<224x512xf32>
    %13 = tpu.matmul %12, %11, %cst_9 {dimension_numbers = #tpu.dot_dimension_numbers<[1], [0], [0], [1], [0, 0, 1, 1], [], []>} : vector<224x224xbf16>, vector<224x512xbf16>, vector<224x512xf32> -> vector<224x512xf32>
    %c0_10 = arith.constant 0 : index
    %c0_11 = arith.constant 0 : index
    %14 = vector.load %arg5[%c0_10, %c0_11] : memref<224x1xf32, #tpu.memory_space<vmem>>, vector<224x1xf32>
    %15 = vector.broadcast %14 : vector<224x1xf32> to vector<224x512xf32>
    %16 = arith.addf %13, %15 : vector<224x512xf32>
    %cst_12 = arith.constant 0.000000e+00 : f32
    %17 = vector.broadcast %cst_12 : f32 to vector<224x512xf32>
    %18 = arith.cmpf oge, %16, %17 : vector<224x512xf32>
    %cst_13 = arith.constant 3.000000e-01 : f32
    %19 = vector.broadcast %cst_13 : f32 to vector<224x512xf32>
    %20 = arith.mulf %19, %16 : vector<224x512xf32>
    %21 = arith.select %18, %16, %20 : vector<224x512xi1>, vector<224x512xf32>
    %22 = arith.truncf %21 : vector<224x512xf32> to vector<224x512xbf16>
    %c0_14 = arith.constant 0 : index
    %c0_15 = arith.constant 0 : index
    %23 = vector.load %arg6[%c0_14, %c0_15] : memref<32x224xbf16, #tpu.memory_space<vmem>>, vector<32x224xbf16>
    %cst_16 = arith.constant dense<0.000000e+00> : vector<32x512xf32>
    %24 = tpu.matmul %23, %22, %cst_16 {dimension_numbers = #tpu.dot_dimension_numbers<[1], [0], [0], [1], [0, 0, 1, 1], [], []>} : vector<32x224xbf16>, vector<224x512xbf16>, vector<32x512xf32> -> vector<32x512xf32>
    %c0_17 = arith.constant 0 : index
    %c0_18 = arith.constant 0 : index
    %25 = vector.load %arg7[%c0_17, %c0_18] : memref<32x1xf32, #tpu.memory_space<vmem>>, vector<32x1xf32>
    %26 = vector.broadcast %25 : vector<32x1xf32> to vector<32x512xf32>
    %27 = arith.addf %24, %26 : vector<32x512xf32>
    %cst_19 = arith.constant 0.000000e+00 : f32
    %28 = vector.broadcast %cst_19 : f32 to vector<32x512xf32>
    %29 = arith.cmpf oge, %27, %28 : vector<32x512xf32>
    %cst_20 = arith.constant 3.000000e-01 : f32
    %30 = vector.broadcast %cst_20 : f32 to vector<32x512xf32>
    %31 = arith.mulf %30, %27 : vector<32x512xf32>
    %32 = arith.select %29, %27, %31 : vector<32x512xi1>, vector<32x512xf32>
    %33 = arith.truncf %32 : vector<32x512xf32> to vector<32x512xbf16>
    %c0_21 = arith.constant 0 : index
    %c0_22 = arith.constant 0 : index
    %34 = vector.load %arg8[%c0_21, %c0_22] : memref<32x512xbf16, #tpu.memory_space<vmem>>, vector<32x512xbf16>
    tpu.vector_store %arg8[%c0_21, %c0_22], %33 {strides = array<i32>} : memref<32x512xbf16, #tpu.memory_space<vmem>>, vector<32x512xbf16>,
    return
  }
  func.func @transform_0(%arg0: i32) -> (i32, i32) {
    %c0_i32 = arith.constant 0 : i32
    %c0_i32_0 = arith.constant 0 : i32
    return %c0_i32, %arg0 : i32, i32
  }
  func.func @transform_1(%arg0: i32) -> (i32, i32) {
    %c0_i32 = arith.constant 0 : i32
    %c0_i32_0 = arith.constant 0 : i32
    %c0_i32_1 = arith.constant 0 : i32
    return %c0_i32, %c0_i32_0 : i32, i32
  }
  func.func @transform_2(%arg0: i32) -> (i32, i32) {
    %c0_i32 = arith.constant 0 : i32
    %c0_i32_0 = arith.constant 0 : i32
    %c0_i32_1 = arith.constant 0 : i32
    return %c0_i32, %c0_i32_0 : i32, i32
  }
  func.func @transform_3(%arg0: i32) -> (i32, i32) {
    %c0_i32 = arith.constant 0 : i32
    %c0_i32_0 = arith.constant 0 : i32
    %c0_i32_1 = arith.constant 0 : i32
    return %c0_i32, %c0_i32_0 : i32, i32
  }
  func.func @transform_4(%arg0: i32) -> (i32, i32) {
    %c0_i32 = arith.constant 0 : i32
    %c0_i32_0 = arith.constant 0 : i32
    %c0_i32_1 = arith.constant 0 : i32
    return %c0_i32, %c0_i32_0 : i32, i32
  }
  func.func @transform_5(%arg0: i32) -> (i32, i32) {
    %c0_i32 = arith.constant 0 : i32
    %c0_i32_0 = arith.constant 0 : i32
    %c0_i32_1 = arith.constant 0 : i32
    return %c0_i32, %c0_i32_0 : i32, i32
  }
  func.func @transform_6(%arg0: i32) -> (i32, i32) {
    %c0_i32 = arith.constant 0 : i32
    %c0_i32_0 = arith.constant 0 : i32
    %c0_i32_1 = arith.constant 0 : i32
    return %c0_i32, %c0_i32_0 : i32, i32
  }
  func.func @transform_7(%arg0: i32) -> (i32, i32) {
    %c0_i32 = arith.constant 0 : i32
    %c0_i32_0 = arith.constant 0 : i32
    return %c0_i32, %arg0 : i32, i32
  }
}

</mosaic_0001>

<llo_original>
// kernel: reblock_forward_packed.1
$region0: #{reblock_forward_packed.1}
  #allocation0 [shape = 'u32[]', space=smem, size = 0x4, offset = 0x4, fixed_abs, tag = 'smem constant byte address 0x4 - core index']
  #allocation1 [shape = 'u32[144,128]{1,0:T(1,128)}', space=vmem, size = 0x12000, scoped, tag = 'internal scratch']
  %s0 = inlined_call_operand.vmem [shape: bf16[32,1024], index: 0, kind: input, shape index: {}]
  %s1 = inlined_call_operand.vmem [shape: bf16[224,32], index: 1, kind: input, shape index: {}]
  %s2 = inlined_call_operand.vmem [shape: f32[224,1], index: 2, kind: input, shape index: {}]
  %s3 = inlined_call_operand.vmem [shape: bf16[224,224], index: 3, kind: input, shape index: {}]
  %s4 = inlined_call_operand.vmem [shape: f32[224,1], index: 4, kind: input, shape index: {}]
  %s5 = inlined_call_operand.vmem [shape: bf16[32,224], index: 5, kind: input, shape index: {}]
  %s6 = inlined_call_operand.vmem [shape: f32[32,1], index: 6, kind: input, shape index: {}]
  %s7 = inlined_call_operand.hbm [shape: bf16[32,1024], index: 7, kind: output, shape index: {}]
  %s8 = sld [smem:[#allocation0]]
  $region84: #{reblock_forward_packed.1} parent=0
    _
  %s10 = ssub.s32 1, %s8
  %s11 = scalar_select 0, %s10, %s8
  $region1: #{reblock_forward_packed.1} parent=0
    #allocation2 [shape = 'u8[65536]{0}', space=vmem, size = 0x10000, scoped, tag = 'input window, operand 0']
    #allocation3 [shape = 'u8[65536]{0}', space=vmem, size = 0x10000, scoped, tag = 'output window, operand 0']
    #allocation4 [shape = 's32[2]{0}', space=sflag, size = 0x8, scoped, tag = 'scoped memory for reblock_forward_packed.1']
    %12 = vsyncpa [#allocation4], 0
    %s13 = scalar_lea.sflag [#allocation4], 1
    %14 = vsyncpa %s13, 0
    loop: start=0, step=1, limit=4
    $region2: #{reblock_forward_packed.1} parent=1 // loop_pre_header
      _
    $region3: #{reblock_forward_packed.1} parent=1 // loop_header
      %s16 = sphi 0, %s20
      %p17 = scmp.ge.s32.totalorder %s16, 4
      %s26 = sphi 0, %s28
      %s29 = sphi 0, %s26
      %s30 = sphi 0, %s29
      %s46 = sphi 0, %s30
      %s50 = sphi 0, %s50
      %s52 = sphi 0, %s50
      %s53 = sphi 0, %s52
      %s67 = sphi 0, %s53
      %s71 = sphi 0, %s71
      %s73 = sphi 0, %s71
      %s74 = sphi 0, %s73
      %s88 = sphi 0, %s74
      %s92 = sphi 0, %s92
      %s94 = sphi 0, %s92
      %s95 = sphi 0, %s94
      %s109 = sphi 0, %s95
      %s113 = sphi 0, %s113
      %s115 = sphi 0, %s113
      %s116 = sphi 0, %s115
      %s130 = sphi 0, %s116
      %s134 = sphi 0, %s134
      %s136 = sphi 0, %s134
      %s137 = sphi 0, %s136
      %s151 = sphi 0, %s137
      %s155 = sphi 0, %s155
      %s157 = sphi 0, %s155
      %s158 = sphi 0, %s157
      %s172 = sphi 0, %s158
      %s178 = sphi 0, %s180
      %s181 = sphi 0, %s178
      %s182 = sphi 0, %s181
      %s198 = sphi 0, %s182
    $region4: #{reblock_forward_packed.1} parent=1 // loop_header_branch
      %19 = sbr.rel (%p17) target = $region8
    $region5: #{reblock_forward_packed.1} parent=1 // loop_body
      %s21 = ssub.s32 %s16, 1
      %s22 = ssub.s32 %s16, 2
      %s23 = sadd.s32 %s16, 1
      %s24 = ssub.s32 %s16, %s23
      %p25 = scmp.eq.s32.totalorder %s24, 0
      %s27 = sadd.s32 %s26, 1
      %s28 = scalar_select %p25, %s26, %s27
      %p31 = pneg %p25
      %p32 = scmp.eq.s32.totalorder %s16, 1
      %p33 = por %p31, %p32
      %p34 = scmp.ne.s32.totalorder %s26, %s29
      %p35 = scmp.eq.s32.totalorder %s16, 0
      %p36 = por %p34, %p35
      %p37 = scmp.ne.s32.totalorder %s26, %s29
      %p38 = scmp.eq.s32.totalorder %s21, 1
      %p39 = por %p37, %p38
      %p40 = scmp.ne.s32.totalorder %s29, %s30
      %p41 = scmp.eq.s32.totalorder %s21, 0
      %p42 = por %p40, %p41
      %p43 = scmp.ne.s32.totalorder %s29, %s30
      %p44 = scmp.eq.s32.totalorder %s22, 1
      %p45 = por %p43, %p44
      %p47 = scmp.ne.s32.totalorder %s30, %s46
      %p48 = scmp.eq.s32.totalorder %s22, 0
      %p49 = por %p47, %p48
      %s51 = sadd.s32 %s50, 1
      %p54 = scmp.eq.s32.totalorder %s16, 1
      %p55 = scmp.ne.s32.totalorder %s50, %s52
      %p56 = scmp.eq.s32.totalorder %s16, 0
      %p57 = por %p55, %p56
      %p58 = scmp.ne.s32.totalorder %s50, %s52
      %p59 = scmp.eq.s32.totalorder %s21, 1
      %p60 = por %p58, %p59
      %p61 = scmp.ne.s32.totalorder %s52, %s53
      %p62 = scmp.eq.s32.totalorder %s21, 0
      %p63 = por %p61, %p62
      %p64 = scmp.ne.s32.totalorder %s52, %s53
      %p65 = scmp.eq.s32.totalorder %s22, 1
      %p66 = por %p64, %p65
      %p68 = scmp.ne.s32.totalorder %s53, %s67
      %p69 = scmp.eq.s32.totalorder %s22, 0
      %p70 = por %p68, %p69
      %s72 = sadd.s32 %s71, 1
      %p75 = scmp.eq.s32.totalorder %s16, 1
      %p76 = scmp.ne.s32.totalorder %s71, %s73
      %p77 = scmp.eq.s32.totalorder %s16, 0
      %p78 = por %p76, %p77
      %p79 = scmp.ne.s32.totalorder %s71, %s73
      %p80 = scmp.eq.s32.totalorder %s21, 1
      %p81 = por %p79, %p80
      %p82 = scmp.ne.s32.totalorder %s73, %s74
      %p83 = scmp.eq.s32.totalorder %s21, 0
      %p84 = por %p82, %p83
      %p85 = scmp.ne.s32.totalorder %s73, %s74
      %p86 = scmp.eq.s32.totalorder %s22, 1
      %p87 = por %p85, %p86
      %p89 = scmp.ne.s32.totalorder %s74, %s88
      %p90 = scmp.eq.s32.totalorder %s22, 0
      %p91 = por %p89, %p90
      %s93 = sadd.s32 %s92, 1
      %p96 = scmp.eq.s32.totalorder %s16, 1
      %p97 = scmp.ne.s32.totalorder %s92, %s94
      %p98 = scmp.eq.s32.totalorder %s16, 0
      %p99 = por %p97, %p98
      %p100 = scmp.ne.s32.totalorder %s92, %s94
      %p101 = scmp.eq.s32.totalorder %s21, 1
      %p102 = por %p100, %p101
      %p103 = scmp.ne.s32.totalorder %s94, %s95
      %p104 = scmp.eq.s32.totalorder %s21, 0
      %p105 = por %p103, %p104
      %p106 = scmp.ne.s32.totalorder %s94, %s95
      %p107 = scmp.eq.s32.totalorder %s22, 1
      %p108 = por %p106, %p107
      %p110 = scmp.ne.s32.totalorder %s95, %s109
      %p111 = scmp.eq.s32.totalorder %s22, 0
      %p112 = por %p110, %p111
      %s114 = sadd.s32 %s113, 1
      %p117 = scmp.eq.s32.totalorder %s16, 1
      %p118 = scmp.ne.s32.totalorder %s113, %s115
      %p119 = scmp.eq.s32.totalorder %s16, 0
      %p120 = por %p118, %p119
      %p121 = scmp.ne.s32.totalorder %s113, %s115
      %p122 = scmp.eq.s32.totalorder %s21, 1
      %p123 = por %p121, %p122
      %p124 = scmp.ne.s32.totalorder %s115, %s116
      %p125 = scmp.eq.s32.totalorder %s21, 0
      %p126 = por %p124, %p125
      %p127 = scmp.ne.s32.totalorder %s115, %s116
      %p128 = scmp.eq.s32.totalorder %s22, 1
      %p129 = por %p127, %p128
      %p131 = scmp.ne.s32.totalorder %s116, %s130
      %p132 = scmp.eq.s32.totalorder %s22, 0
      %p133 = por %p131, %p132
      %s135 = sadd.s32 %s134, 1
      %p138 = scmp.eq.s32.totalorder %s16, 1
      %p139 = scmp.ne.s32.totalorder %s134, %s136
      %p140 = scmp.eq.s32.totalorder %s16, 0
      %p141 = por %p139, %p140
      %p142 = scmp.ne.s32.totalorder %s134, %s136
      %p143 = scmp.eq.s32.totalorder %s21, 1
      %p144 = por %p142, %p143
      %p145 = scmp.ne.s32.totalorder %s136, %s137
      %p146 = scmp.eq.s32.totalorder %s21, 0
      %p147 = por %p145, %p146
      %p148 = scmp.ne.s32.totalorder %s136, %s137
      %p149 = scmp.eq.s32.totalorder %s22, 1
      %p150 = por %p148, %p149
      %p152 = scmp.ne.s32.totalorder %s137, %s151
      %p153 = scmp.eq.s32.totalorder %s22, 0
      %p154 = por %p152, %p153
      %s156 = sadd.s32 %s155, 1
      %p159 = scmp.eq.s32.totalorder %s16, 1
      %p160 = scmp.ne.s32.totalorder %s155, %s157
      %p161 = scmp.eq.s32.totalorder %s16, 0
      %p162 = por %p160, %p161
      %p163 = scmp.ne.s32.totalorder %s155, %s157
      %p164 = scmp.eq.s32.totalorder %s21, 1
      %p165 = por %p163, %p164
      %p166 = scmp.ne.s32.totalorder %s157, %s158
      %p167 = scmp.eq.s32.totalorder %s21, 0
      %p168 = por %p166, %p167
      %p169 = scmp.ne.s32.totalorder %s157, %s158
      %p170 = scmp.eq.s32.totalorder %s22, 1
      %p171 = por %p169, %p170
      %p173 = scmp.ne.s32.totalorder %s158, %s172
      %p174 = scmp.eq.s32.totalorder %s22, 0
      %p175 = por %p173, %p174
      %s176 = ssub.s32 %s16, %s23
      %p177 = scmp.eq.s32.totalorder %s176, 0
      %s179 = sadd.s32 %s178, 1
      %s180 = scalar_select %p177, %s178, %s179
      %p183 = pneg %p177
      %p184 = scmp.eq.s32.totalorder %s16, 1
      %p185 = por %p183, %p184
      %p186 = scmp.ne.s32.totalorder %s178, %s181
      %p187 = scmp.eq.s32.totalorder %s16, 0
      %p188 = por %p186, %p187
      %p189 = scmp.ne.s32.totalorder %s178, %s181
      %p190 = scmp.eq.s32.totalorder %s21, 1
      %p191 = por %p189, %p190
      %p192 = scmp.ne.s32.totalorder %s181, %s182
      %p193 = scmp.eq.s32.totalorder %s21, 0
      %p194 = por %p192, %p193
      %p195 = scmp.ne.s32.totalorder %s181, %s182
      %p196 = scmp.eq.s32.totalorder %s22, 1
      %p197 = por %p195, %p196
      %p199 = scmp.ne.s32.totalorder %s182, %s198
      %p200 = scmp.eq.s32.totalorder %s22, 0
      %p201 = por %p199, %p200
      %p202 = scmp.le.s32.totalorder 1, %s16
      %p203 = scmp.lt.s32.totalorder %s16, 3
      %p204 = pnand %p202, %p203
      %p205 = pneg %p204
      // Predicated region
      $region9: #{reblock_forward_packed.1} parent=5 // pred_check
        _
      $region10: #{reblock_forward_packed.1} parent=5 // pred_check_branch
        %207 = sbr.rel (%p204) target = $region12
      $region11: #{reblock_forward_packed.1} parent=5 // pred_region
        %s208 = ssub.s32 %s16, 1
        // Predicated region
        $region13: #{reblock_forward_packed.1} parent=11 // pred_check
          %p209 = pneg %p63
        $region14: #{reblock_forward_packed.1} parent=11 // pred_check_branch
          %211 = sbr.rel (%p209) target = $region16
        $region15: #{reblock_forward_packed.1} parent=11 // pred_region
          _
        $region16: #{reblock_forward_packed.1} parent=11 // pred_fallthru
          _
        // Predicated region
        $region17: #{reblock_forward_packed.1} parent=11 // pred_check
          %p212 = pneg %p84
        $region18: #{reblock_forward_packed.1} parent=11 // pred_check_branch
          %214 = sbr.rel (%p212) target = $region20
        $region19: #{reblock_forward_packed.1} parent=11 // pred_region
          _
        $region20: #{reblock_forward_packed.1} parent=11 // pred_fallthru
          _
        // Predicated region
        $region21: #{reblock_forward_packed.1} parent=11 // pred_check
          %p215 = pneg %p105
        $region22: #{reblock_forward_packed.1} parent=11 // pred_check_branch
          %217 = sbr.rel (%p215) target = $region24
        $region23: #{reblock_forward_packed.1} parent=11 // pred_region
          _
        $region24: #{reblock_forward_packed.1} parent=11 // pred_fallthru
          _
        // Predicated region
        $region25: #{reblock_forward_packed.1} parent=11 // pred_check
          %p218 = pneg %p126
        $region26: #{reblock_forward_packed.1} parent=11 // pred_check_branch
          %220 = sbr.rel (%p218) target = $region28
        $region27: #{reblock_forward_packed.1} parent=11 // pred_region
          _
        $region28: #{reblock_forward_packed.1} parent=11 // pred_fallthru
          _
        // Predicated region
        $region29: #{reblock_forward_packed.1} parent=11 // pred_check
          %p221 = pneg %p147
        $region30: #{reblock_forward_packed.1} parent=11 // pred_check_branch
          %223 = sbr.rel (%p221) target = $region32
        $region31: #{reblock_forward_packed.1} parent=11 // pred_region
          _
        $region32: #{reblock_forward_packed.1} parent=11 // pred_fallthru
          _
        // Predicated region
        $region33: #{reblock_forward_packed.1} parent=11 // pred_check
          %p224 = pneg %p168
        $region34: #{reblock_forward_packed.1} parent=11 // pred_check_branch
          %226 = sbr.rel (%p224) target = $region36
        $region35: #{reblock_forward_packed.1} parent=11 // pred_region
          _
        $region36: #{reblock_forward_packed.1} parent=11 // pred_fallthru
          _
      $region12: #{reblock_forward_packed.1} parent=5 // pred_fallthru
        _
      %p227 = scmp.lt.s32.totalorder %s16, 2
      // Predicated region
      $region37: #{reblock_forward_packed.1} parent=5 // pred_check
        %p228 = pneg %p227
      $region38: #{reblock_forward_packed.1} parent=5 // pred_check_branch
        %230 = sbr.rel (%p228) target = $region40
      $region39: #{reblock_forward_packed.1} parent=5 // pred_region
        // Predicated region
        $region41: #{reblock_forward_packed.1} parent=39 // pred_check
          %p231 = pneg %p36
        $region42: #{reblock_forward_packed.1} parent=39 // pred_check_branch
          %233 = sbr.rel (%p231) target = $region44
        $region43: #{reblock_forward_packed.1} parent=39 // pred_region
          %s234 = sand.u32 %s26, 1
          %s235 = sand.u32 %s26, 1
          %s236 = smul.addr %s235, 64
          %s237 = scalar_lea.vmem [#allocation2], %s236
          %s238 = smul.u32 4, %s16
          %s239 = smul.addr %s238, 4
          %s240 = scalar_lea.vmem %s0, %s239
          // Predicated region
          $region45: #{reblock_forward_packed.1} parent=43 // pred_check
            _
          $region46: #{reblock_forward_packed.1} parent=43 // pred_check_branch
            %242 = sbr.rel (0) target = $region48
          $region47: #{reblock_forward_packed.1} parent=43 // pred_region
            // Predicated region
            $region49: #{reblock_forward_packed.1} parent=47 // pred_check
              _
            $region50: #{reblock_forward_packed.1} parent=47 // pred_check_branch
              %244 = sbr.rel (0) target = $region52
            $region51: #{reblock_forward_packed.1} parent=47 // pred_region
              loop: start=0, step=1, limit=1
              $region53: #{reblock_forward_packed.1} parent=51 // loop_pre_header
                _
              $region54: #{reblock_forward_packed.1} parent=51 // loop_header
                %s246 = sphi 0, %s250
                %p247 = scmp.ge.s32.totalorder %s246, 1
                %s251 = sphi %s240, %s240
                %s252 = sphi %s237, %s237
              $region55: #{reblock_forward_packed.1} parent=51 // loop_header_branch
                %249 = sbr.rel (%p247) target = $region59
              $region56: #{reblock_forward_packed.1} parent=51 // loop_body
                %v253 = vld [vmem:[%s251] sm:$0xff]
                %254 = vst [vmem:[%s252] sm:$0xff] %v253
                %v255 = vld [vmem:[%s251 + $0x8] sm:$0xff]
                %256 = vst [vmem:[%s252 + $0x8] sm:$0xff] %v255
                %v257 = vld [vmem:[%s251 + $0x20] sm:$0xff]
                %258 = vst [vmem:[%s252 + $0x10] sm:$0xff] %v257
                %v259 = vld [vmem:[%s251 + $0x28] sm:$0xff]
                %260 = vst [vmem:[%s252 + $0x18] sm:$0xff] %v259
                %v261 = vld [vmem:[%s251 + $0x40] sm:$0xff]
                %262 = vst [vmem:[%s252 + $0x20] sm:$0xff] %v261
                %v263 = vld [vmem:[%s251 + $0x48] sm:$0xff]
                %264 = vst [vmem:[%s252 + $0x28] sm:$0xff] %v263
                %v265 = vld [vmem:[%s251 + $0x60] sm:$0xff]
                %266 = vst [vmem:[%s252 + $0x30] sm:$0xff] %v265
                %v267 = vld [vmem:[%s251 + $0x68] sm:$0xff]
                %268 = vst [vmem:[%s252 + $0x38] sm:$0xff] %v267
              $region57: #{reblock_forward_packed.1} parent=51 // loop_footer
                %s250 = sadd.s32 1, %s246
              $region58: #{reblock_forward_packed.1} parent=51 // loop_footer_branch
                %245 = sbr.rel target = $region54
              $region59: #{reblock_forward_packed.1} parent=51 // loop_exit
                _
            $region52: #{reblock_forward_packed.1} parent=47 // pred_fallthru
              _
            // Predicated region
            $region60: #{reblock_forward_packed.1} parent=47 // pred_check
              _
            $region61: #{reblock_forward_packed.1} parent=47 // pred_check_branch
              %270 = sbr.rel target = $region63
            $region62: #{reblock_forward_packed.1} parent=47 // pred_region
              _
            $region63: #{reblock_forward_packed.1} parent=47 // pred_fallthru
              _
          $region48: #{reblock_forward_packed.1} parent=43 // pred_fallthru
            _
          %271 = vnop
        $region44: #{reblock_forward_packed.1} parent=39 // pred_fallthru
          _
      $region40: #{reblock_forward_packed.1} parent=5 // pred_fallthru
        _
      %p272 = scmp.le.s32.totalorder 1, %s16
      %p273 = scmp.lt.s32.totalorder %s16, 3
      %p274 = pnand %p272, %p273
      %p275 = pneg %p274
      // Predicated region
      $region64: #{reblock_forward_packed.1} parent=5 // pred_check
        _
      $region65: #{reblock_forward_packed.1} parent=5 // pred_check_branch
        %277 = sbr.rel (%p274) target = $region67
      $region66: #{reblock_forward_packed.1} parent=5 // pred_region
        %s278 = ssub.s32 %s16, 1
        %s279 = sand.u32 %s29, 1
        %s280 = sand.u32 %s29, 1
        %s281 = smul.addr %s280, 64
        %s282 = scalar_lea.vmem [#allocation2], %s281
        // Predicated region
        $region68: #{reblock_forward_packed.1} parent=66 // pred_check
          %p283 = pneg %p42
        $region69: #{reblock_forward_packed.1} parent=66 // pred_check_branch
          %285 = sbr.rel (%p283) target = $region71
        $region70: #{reblock_forward_packed.1} parent=66 // pred_region
          _
        $region71: #{reblock_forward_packed.1} parent=66 // pred_fallthru
          _
        %s286 = sand.u32 %s29, 1
        %s287 = sand.u32 %s29, 1
        %s288 = smul.addr %s287, 64
        %s289 = scalar_lea.vmem [#allocation2], %s288
        %p290 = pneg %p42
        %p291 = pneg %p39
        %p292 = pneg %p63
        %p293 = pneg %p60
        %p294 = pneg %p84
        %p295 = pneg %p81
        %p296 = pneg %p105
        %p297 = pneg %p102
        %p298 = pneg %p126
        %p299 = pneg %p123
        %p300 = pneg %p147
        %p301 = pneg %p144
        %p302 = pneg %p168
        %p303 = pneg %p165
        %p304 = pneg %p194
        %p305 = pneg %p191
        %s306 = sand.u32 %s181, 1
        %s307 = scalar_lea.sflag [#allocation4], %s306
        %s308 = sand.u32 %s181, 1
        %s309 = smul.addr %s308, 64
        %s310 = scalar_lea.vmem [#allocation3], %s309
        %s311 = smul.u32 4, %s21
        %s312 = smul.u32 4, %s21
        %v314 = vld [vmem:[%s282] sm:$0xff]
        %v315 = vld [vmem:[%s282 + $0x8] sm:$0xff]
        %v316 = vld [vmem:[%s282 + $0x10] sm:$0xff]
        %v317 = vld [vmem:[%s282 + $0x18] sm:$0xff]
        %v318 = vld [vmem:[%s282 + $0x20] sm:$0xff]
        %v319 = vld [vmem:[%s282 + $0x28] sm:$0xff]
        %v320 = vld [vmem:[%s282 + $0x30] sm:$0xff]
        %v321 = vld [vmem:[%s282 + $0x38] sm:$0xff]
        %v322 = vld [vmem:[%s1] sm:$0xf]
        %v323 = vld [vmem:[%s1 + $0x4] sm:$0xf]
        %v324 = vld [vmem:[%s1 + $0x8] sm:$0xf]
        %v325 = vld [vmem:[%s1 + $0xc] sm:$0xf]
        %v326 = vld [vmem:[%s1 + $0x10] sm:$0xf]
        %v327 = vld [vmem:[%s1 + $0x14] sm:$0xf]
        %v328 = vld [vmem:[%s1 + $0x18] sm:$0xf]
        %v329 = vld [vmem:[%s1 + $0x1c] sm:$0xf]
        %v330 = vld [vmem:[%s1 + $0x20] sm:$0xf]
        %v331 = vld [vmem:[%s1 + $0x24] sm:$0xf]
        %v332 = vld [vmem:[%s1 + $0x28] sm:$0xf]
        %v333 = vld [vmem:[%s1 + $0x2c] sm:$0xf]
        %v334 = vld [vmem:[%s1 + $0x30] sm:$0xf]
        %v335 = vld [vmem:[%s1 + $0x34] sm:$0xf]
        %v336 = vld [vmem:[%s1 + $0x38] sm:$0xf]
        %v337 = vld [vmem:[%s1 + $0x3c] sm:$0xf]
        %v338 = vld [vmem:[%s1 + $0x40] sm:$0xf]
        %v339 = vld [vmem:[%s1 + $0x44] sm:$0xf]
        %v340 = vld [vmem:[%s1 + $0x48] sm:$0xf]
        %v341 = vld [vmem:[%s1 + $0x4c] sm:$0xf]
        %v342 = vld [vmem:[%s1 + $0x50] sm:$0xf]
        %v343 = vld [vmem:[%s1 + $0x54] sm:$0xf]
        %v344 = vld [vmem:[%s1 + $0x58] sm:$0xf]
        %v345 = vld [vmem:[%s1 + $0x5c] sm:$0xf]
        %v346 = vld [vmem:[%s1 + $0x60] sm:$0xf]
        %v347 = vld [vmem:[%s1 + $0x64] sm:$0xf]
        %v348 = vld [vmem:[%s1 + $0x68] sm:$0xf]
        %v349 = vld [vmem:[%s1 + $0x6c] sm:$0xf]
        %v350 = vld [vmem:[%s2] sm:$0xff]
        %v351 = vld [vmem:[%s2 + $0x8] sm:$0xff]
        %v352 = vld [vmem:[%s2 + $0x10] sm:$0xff]
        %v353 = vld [vmem:[%s2 + $0x18] sm:$0xff]
        %v354 = vld [vmem:[%s2 + $0x20] sm:$0xff]
        %v355 = vld [vmem:[%s2 + $0x28] sm:$0xff]
        %v356 = vld [vmem:[%s2 + $0x30] sm:$0xff]
        %v357 = vld [vmem:[%s2 + $0x38] sm:$0xff]
        %v358 = vld [vmem:[%s2 + $0x40] sm:$0xff]
        %v359 = vld [vmem:[%s2 + $0x48] sm:$0xff]
        %v360 = vld [vmem:[%s2 + $0x50] sm:$0xff]
        %v361 = vld [vmem:[%s2 + $0x58] sm:$0xff]
        %v362 = vld [vmem:[%s2 + $0x60] sm:$0xff]
        %v363 = vld [vmem:[%s2 + $0x68] sm:$0xff]
        %v364 = vld [vmem:[%s2 + $0x70] sm:$0xff]
        %v365 = vld [vmem:[%s2 + $0x78] sm:$0xff]
        %v366 = vld [vmem:[%s2 + $0x80] sm:$0xff]
        %v367 = vld [vmem:[%s2 + $0x88] sm:$0xff]
        %v368 = vld [vmem:[%s2 + $0x90] sm:$0xff]
        %v369 = vld [vmem:[%s2 + $0x98] sm:$0xff]
        %v370 = vld [vmem:[%s2 + $0xa0] sm:$0xff]
        %v371 = vld [vmem:[%s2 + $0xa8] sm:$0xff]
        %v372 = vld [vmem:[%s2 + $0xb0] sm:$0xff]
        %v373 = vld [vmem:[%s2 + $0xb8] sm:$0xff]
        %v374 = vld [vmem:[%s2 + $0xc0] sm:$0xff]
        %v375 = vld [vmem:[%s2 + $0xc8] sm:$0xff]
        %v376 = vld [vmem:[%s2 + $0xd0] sm:$0xff]
        %v377 = vld [vmem:[%s2 + $0xd8] sm:$0xff]
        %379 = vset.pattern.permute.xlu0 0
        %380 = vperm.xlu0 %379, %v350
        %v381 = vpop.permute.xlu0 %380
        %384 = vset.pattern.permute.xlu0 0
        %385 = vperm.xlu0 %384, %v351
        %v386 = vpop.permute.xlu0 %385
        %389 = vset.pattern.permute.xlu0 0
        %390 = vperm.xlu0 %389, %v352
        %v391 = vpop.permute.xlu0 %390
        %394 = vset.pattern.permute.xlu0 0
        %395 = vperm.xlu0 %394, %v353
        %v396 = vpop.permute.xlu0 %395
        %399 = vset.pattern.permute.xlu0 0
        %400 = vperm.xlu0 %399, %v354
        %v401 = vpop.permute.xlu0 %400
        %404 = vset.pattern.permute.xlu0 0
        %405 = vperm.xlu0 %404, %v355
        %v406 = vpop.permute.xlu0 %405
        %409 = vset.pattern.permute.xlu0 0
        %410 = vperm.xlu0 %409, %v356
        %v411 = vpop.permute.xlu0 %410
        %414 = vset.pattern.permute.xlu0 0
        %415 = vperm.xlu0 %414, %v357
        %v416 = vpop.permute.xlu0 %415
        %419 = vset.pattern.permute.xlu0 0
        %420 = vperm.xlu0 %419, %v358
        %v421 = vpop.permute.xlu0 %420
        %424 = vset.pattern.permute.xlu0 0
        %425 = vperm.xlu0 %424, %v359
        %v426 = vpop.permute.xlu0 %425
        %429 = vset.pattern.permute.xlu0 0
        %430 = vperm.xlu0 %429, %v360
        %v431 = vpop.permute.xlu0 %430
        %434 = vset.pattern.permute.xlu0 0
        %435 = vperm.xlu0 %434, %v361
        %v436 = vpop.permute.xlu0 %435
        %439 = vset.pattern.permute.xlu0 0
        %440 = vperm.xlu0 %439, %v362
        %v441 = vpop.permute.xlu0 %440
        %444 = vset.pattern.permute.xlu0 0
        %445 = vperm.xlu0 %444, %v363
        %v446 = vpop.permute.xlu0 %445
        %449 = vset.pattern.permute.xlu0 0
        %450 = vperm.xlu0 %449, %v364
        %v451 = vpop.permute.xlu0 %450
        %454 = vset.pattern.permute.xlu0 0
        %455 = vperm.xlu0 %454, %v365
        %v456 = vpop.permute.xlu0 %455
        %459 = vset.pattern.permute.xlu0 0
        %460 = vperm.xlu0 %459, %v366
        %v461 = vpop.permute.xlu0 %460
        %464 = vset.pattern.permute.xlu0 0
        %465 = vperm.xlu0 %464, %v367
        %v466 = vpop.permute.xlu0 %465
        %469 = vset.pattern.permute.xlu0 0
        %470 = vperm.xlu0 %469, %v368
        %v471 = vpop.permute.xlu0 %470
        %474 = vset.pattern.permute.xlu0 0
        %475 = vperm.xlu0 %474, %v369
        %v476 = vpop.permute.xlu0 %475
        %479 = vset.pattern.permute.xlu0 0
        %480 = vperm.xlu0 %479, %v370
        %v481 = vpop.permute.xlu0 %480
        %484 = vset.pattern.permute.xlu0 0
        %485 = vperm.xlu0 %484, %v371
        %v486 = vpop.permute.xlu0 %485
        %489 = vset.pattern.permute.xlu0 0
        %490 = vperm.xlu0 %489, %v372
        %v491 = vpop.permute.xlu0 %490
        %494 = vset.pattern.permute.xlu0 0
        %495 = vperm.xlu0 %494, %v373
        %v496 = vpop.permute.xlu0 %495
        %499 = vset.pattern.permute.xlu0 0
        %500 = vperm.xlu0 %499, %v374
        %v501 = vpop.permute.xlu0 %500
        %504 = vset.pattern.permute.xlu0 0
        %505 = vperm.xlu0 %504, %v375
        %v506 = vpop.permute.xlu0 %505
        %509 = vset.pattern.permute.xlu0 0
        %510 = vperm.xlu0 %509, %v376
        %v511 = vpop.permute.xlu0 %510
        %514 = vset.pattern.permute.xlu0 0
        %515 = vperm.xlu0 %514, %v377
        %v516 = vpop.permute.xlu0 %515
        %v546 = vunpack.c.l.b16 %v322
        %v547 = vunpack.c.l.b16 %v323
        %v548 = vunpack.c.l.b16 %v324
        %v549 = vunpack.c.l.b16 %v325
        %v550 = vunpack.c.l.b16 %v326
        %v551 = vunpack.c.l.b16 %v327
        %v552 = vunpack.c.l.b16 %v328
        %v553 = vunpack.c.l.b16 %v329
        %v554 = vunpack.c.l.b16 %v330
        %v555 = vunpack.c.l.b16 %v331
        %v556 = vunpack.c.l.b16 %v332
        %v557 = vunpack.c.l.b16 %v333
        %v558 = vunpack.c.l.b16 %v334
        %v559 = vunpack.c.l.b16 %v335
        %v560 = vunpack.c.l.b16 %v336
        %v561 = vunpack.c.l.b16 %v337
        %v562 = vunpack.c.l.b16 %v338
        %v563 = vunpack.c.l.b16 %v339
        %v564 = vunpack.c.l.b16 %v340
        %v565 = vunpack.c.l.b16 %v341
        %v566 = vunpack.c.l.b16 %v342
        %v567 = vunpack.c.l.b16 %v343
        %v568 = vunpack.c.l.b16 %v344
        %v569 = vunpack.c.l.b16 %v345
        %v570 = vunpack.c.l.b16 %v346
        %v571 = vunpack.c.l.b16 %v347
        %v572 = vunpack.c.l.b16 %v348
        %v573 = vunpack.c.l.b16 %v349
        %v574 = vpack.c.b16 %v547, %v546
        %v575 = vpack.c.b16 %v549, %v548
        %v576 = vpack.c.b16 %v551, %v550
        %v577 = vpack.c.b16 %v553, %v552
        %v578 = vpack.c.b16 %v555, %v554
        %v579 = vpack.c.b16 %v557, %v556
        %v580 = vpack.c.b16 %v559, %v558
        %v581 = vpack.c.b16 %v561, %v560
        %v582 = vpack.c.b16 %v563, %v562
        %v583 = vpack.c.b16 %v565, %v564
        %v584 = vpack.c.b16 %v567, %v566
        %v585 = vpack.c.b16 %v569, %v568
        %v586 = vpack.c.b16 %v571, %v570
        %v587 = vpack.c.b16 %v573, %v572
        %v596 = vunpack.c.l.b16 %v314
        %v597 = vunpack.c.h.b16 %v314
        %v598 = vunpack.c.l.b16 %v315
        %v599 = vunpack.c.h.b16 %v315
        %v600 = vunpack.c.l.b16 %v316
        %v601 = vunpack.c.h.b16 %v316
        %v602 = vunpack.c.l.b16 %v317
        %v603 = vunpack.c.h.b16 %v317
        %v604 = vunpack.c.l.b16 %v318
        %v605 = vunpack.c.h.b16 %v318
        %v606 = vunpack.c.l.b16 %v319
        %v607 = vunpack.c.h.b16 %v319
        %v608 = vunpack.c.l.b16 %v320
        %v609 = vunpack.c.h.b16 %v320
        %v610 = vunpack.c.l.b16 %v321
        %v611 = vunpack.c.h.b16 %v321
        %v612 = vpack.c.b16 %v600, %v596
        %v613 = vpack.c.b16 %v601, %v597
        %v614 = vpack.c.b16 %v602, %v598
        %v615 = vpack.c.b16 %v603, %v599
        %v616 = vpack.c.b16 %v608, %v604
        %v617 = vpack.c.b16 %v609, %v605
        %v618 = vpack.c.b16 %v610, %v606
        %v619 = vpack.c.b16 %v611, %v607
        %vm628 = vcmask 261120
        %v630 = vsel %vm628, %v574, 0
        %v633 = vsel %vm628, %v575, 0
        %v636 = vsel %vm628, %v576, 0
        %v639 = vsel %vm628, %v577, 0
        %v642 = vsel %vm628, %v578, 0
        %v645 = vsel %vm628, %v579, 0
        %v648 = vsel %vm628, %v580, 0
        %v651 = vsel %vm628, %v581, 0
        %v654 = vsel %vm628, %v582, 0
        %v657 = vsel %vm628, %v583, 0
        %v660 = vsel %vm628, %v584, 0
        %v663 = vsel %vm628, %v585, 0
        %v666 = vsel %vm628, %v586, 0
        %v669 = vsel %vm628, %v587, 0
        %671 = vmatprep.subr.bf16.mxu0 %v613
        %672 = vmatpush1.bf16.msra.mxu0 %v612
        %673 = vmatprep.subr.bf16.mxu0 %v617
        %674 = vmatpush1.bf16.msra.mxu0 %v616
        %675 = vmatprep.subr.bf16.mxu0 0
        %676 = vmatpush1.bf16.msra.mxu0 0
        %677 = vmatprep.subr.bf16.mxu0 0
        %678 = vmatpush1.bf16.msra.mxu0 0
        %679 = vmatprep.subr.bf16.mxu0 0
        %680 = vmatpush1.bf16.msra.mxu0 0
        %681 = vmatprep.subr.bf16.mxu0 0
        %682 = vmatpush1.bf16.msra.mxu0 0
        %683 = vmatprep.subr.bf16.mxu0 0
        %684 = vmatpush1.bf16.msra.mxu0 0
        %685 = vmatprep.subr.bf16.mxu0 0
        %686 = vmatpush1.bf16.msra.mxu0 0
        %687 = vmatprep.subr.bf16.mxu0 0
        %688 = vmatpush1.bf16.msra.mxu0 0
        %689 = vmatprep.subr.bf16.mxu0 0
        %690 = vmatpush1.bf16.msra.mxu0 0
        %691 = vmatprep.subr.bf16.mxu0 0
        %692 = vmatpush1.bf16.msra.mxu0 0
        %693 = vmatprep.subr.bf16.mxu0 0
        %694 = vmatpush1.bf16.msra.mxu0 0
        %695 = vmatprep.subr.bf16.mxu0 0
        %696 = vmatpush1.bf16.msra.mxu0 0
        %697 = vmatprep.subr.bf16.mxu0 0
        %698 = vmatpush1.bf16.msra.mxu0 0
        %699 = vmatprep.subr.bf16.mxu0 0
        %700 = vmatpush1.bf16.msra.mxu0 0
        %701 = vmatprep.subr.bf16.mxu0 0
        %702 = vmatpush1.bf16.msra.mxu0 0
        %703 = vmatprep.mubr.bf16.mxu0 0
        %704 = vmatmul.mubr.bf16.gmra.mrb[0].mxu0 %v630
        %v705 = vpop.f32.mrb[0].mxu0
        %v706 = vadd.f32 %v381, %v705
        %v707 = vpop.f32.mrb[0].mxu0
        %v708 = vadd.f32 %v381, %v707
        %v709 = vpop.f32.mrb[0].mxu0
        %v710 = vadd.f32 %v386, %v709
        %v711 = vpop.f32.mrb[0].mxu0
        %v712 = vadd.f32 %v386, %v711
        %713 = vmatprep.mubr.bf16.mxu0 0
        %714 = vmatmul.mubr.bf16.gmra.mrb[0].mxu0 %v633
        %v715 = vpop.f32.mrb[0].mxu0
        %v716 = vadd.f32 %v391, %v715
        %v717 = vpop.f32.mrb[0].mxu0
        %v718 = vadd.f32 %v391, %v717
        %v719 = vpop.f32.mrb[0].mxu0
        %v720 = vadd.f32 %v396, %v719
        %v721 = vpop.f32.mrb[0].mxu0
        %v722 = vadd.f32 %v396, %v721
        %723 = vmatprep.mubr.bf16.mxu0 0
        %724 = vmatmul.mubr.bf16.gmra.mrb[0].mxu0 %v636
        %v725 = vpop.f32.mrb[0].mxu0
        %v726 = vadd.f32 %v401, %v725
        %v727 = vpop.f32.mrb[0].mxu0
        %v728 = vadd.f32 %v401, %v727
        %v729 = vpop.f32.mrb[0].mxu0
        %v730 = vadd.f32 %v406, %v729
        %v731 = vpop.f32.mrb[0].mxu0
        %v732 = vadd.f32 %v406, %v731
        %733 = vmatprep.mubr.bf16.mxu0 0
        %734 = vmatmul.mubr.bf16.gmra.mrb[0].mxu0 %v639
        %v735 = vpop.f32.mrb[0].mxu0
        %v736 = vadd.f32 %v411, %v735
        %v737 = vpop.f32.mrb[0].mxu0
        %v738 = vadd.f32 %v411, %v737
        %v739 = vpop.f32.mrb[0].mxu0
        %v740 = vadd.f32 %v416, %v739
        %v741 = vpop.f32.mrb[0].mxu0
        %v742 = vadd.f32 %v416, %v741
        %743 = vmatprep.mubr.bf16.mxu0 0
        %744 = vmatmul.mubr.bf16.gmra.mrb[0].mxu0 %v642
        %v745 = vpop.f32.mrb[0].mxu0
        %v746 = vadd.f32 %v421, %v745
        %v747 = vpop.f32.mrb[0].mxu0
        %v748 = vadd.f32 %v421, %v747
        %v749 = vpop.f32.mrb[0].mxu0
        %v750 = vadd.f32 %v426, %v749
        %v751 = vpop.f32.mrb[0].mxu0
        %v752 = vadd.f32 %v426, %v751
        %753 = vmatprep.mubr.bf16.mxu0 0
        %754 = vmatmul.mubr.bf16.gmra.mrb[0].mxu0 %v645
        %v755 = vpop.f32.mrb[0].mxu0
        %v756 = vadd.f32 %v431, %v755
        %v757 = vpop.f32.mrb[0].mxu0
        %v758 = vadd.f32 %v431, %v757
        %v759 = vpop.f32.mrb[0].mxu0
        %v760 = vadd.f32 %v436, %v759
        %v761 = vpop.f32.mrb[0].mxu0
        %v762 = vadd.f32 %v436, %v761
        %763 = vmatprep.mubr.bf16.mxu0 0
        %764 = vmatmul.mubr.bf16.gmra.mrb[0].mxu0 %v648
        %v765 = vpop.f32.mrb[0].mxu0
        %v766 = vadd.f32 %v441, %v765
        %v767 = vpop.f32.mrb[0].mxu0
        %v768 = vadd.f32 %v441, %v767
        %v769 = vpop.f32.mrb[0].mxu0
        %v770 = vadd.f32 %v446, %v769
        %v771 = vpop.f32.mrb[0].mxu0
        %v772 = vadd.f32 %v446, %v771
        %773 = vmatprep.mubr.bf16.mxu0 0
        %774 = vmatmul.mubr.bf16.gmra.mrb[0].mxu0 %v651
        %v775 = vpop.f32.mrb[0].mxu0
        %v776 = vadd.f32 %v451, %v775
        %v777 = vpop.f32.mrb[0].mxu0
        %v778 = vadd.f32 %v451, %v777
        %v779 = vpop.f32.mrb[0].mxu0
        %v780 = vadd.f32 %v456, %v779
        %v781 = vpop.f32.mrb[0].mxu0
        %v782 = vadd.f32 %v456, %v781
        %783 = vmatprep.mubr.bf16.mxu0 0
        %784 = vmatmul.mubr.bf16.gmra.mrb[0].mxu0 %v654
        %v785 = vpop.f32.mrb[0].mxu0
        %v786 = vadd.f32 %v461, %v785
        %v787 = vpop.f32.mrb[0].mxu0
        %v788 = vadd.f32 %v461, %v787
        %v789 = vpop.f32.mrb[0].mxu0
        %v790 = vadd.f32 %v466, %v789
        %v791 = vpop.f32.mrb[0].mxu0
        %v792 = vadd.f32 %v466, %v791
        %793 = vmatprep.mubr.bf16.mxu0 0
        %794 = vmatmul.mubr.bf16.gmra.mrb[0].mxu0 %v657
        %v795 = vpop.f32.mrb[0].mxu0
        %v796 = vadd.f32 %v471, %v795
        %v797 = vpop.f32.mrb[0].mxu0
        %v798 = vadd.f32 %v471, %v797
        %v799 = vpop.f32.mrb[0].mxu0
        %v800 = vadd.f32 %v476, %v799
        %v801 = vpop.f32.mrb[0].mxu0
        %v802 = vadd.f32 %v476, %v801
        %803 = vmatprep.mubr.bf16.mxu0 0
        %804 = vmatmul.mubr.bf16.gmra.mrb[0].mxu0 %v660
        %v805 = vpop.f32.mrb[0].mxu0
        %v806 = vadd.f32 %v481, %v805
        %v807 = vpop.f32.mrb[0].mxu0
        %v808 = vadd.f32 %v481, %v807
        %v809 = vpop.f32.mrb[0].mxu0
        %v810 = vadd.f32 %v486, %v809
        %v811 = vpop.f32.mrb[0].mxu0
        %v812 = vadd.f32 %v486, %v811
        %813 = vmatprep.mubr.bf16.mxu0 0
        %814 = vmatmul.mubr.bf16.gmra.mrb[0].mxu0 %v663
        %v815 = vpop.f32.mrb[0].mxu0
        %v816 = vadd.f32 %v491, %v815
        %v817 = vpop.f32.mrb[0].mxu0
        %v818 = vadd.f32 %v491, %v817
        %v819 = vpop.f32.mrb[0].mxu0
        %v820 = vadd.f32 %v496, %v819
        %v821 = vpop.f32.mrb[0].mxu0
        %v822 = vadd.f32 %v496, %v821
        %823 = vmatprep.mubr.bf16.mxu0 0
        %824 = vmatmul.mubr.bf16.gmra.mrb[0].mxu0 %v666
        %v825 = vpop.f32.mrb[0].mxu0
        %v826 = vadd.f32 %v501, %v825
        %v827 = vpop.f32.mrb[0].mxu0
        %v828 = vadd.f32 %v501, %v827
        %v829 = vpop.f32.mrb[0].mxu0
        %v830 = vadd.f32 %v506, %v829
        %v831 = vpop.f32.mrb[0].mxu0
        %v832 = vadd.f32 %v506, %v831
        %833 = vmatprep.mubr.bf16.mxu0 0
        %834 = vmatmul.mubr.bf16.gmra.mrb[0].mxu0 %v669
        %v835 = vpop.f32.mrb[0].mxu0
        %v836 = vadd.f32 %v511, %v835
        %v837 = vpop.f32.mrb[0].mxu0
        %v838 = vadd.f32 %v511, %v837
        %v839 = vpop.f32.mrb[0].mxu0
        %v840 = vadd.f32 %v516, %v839
        %v841 = vpop.f32.mrb[0].mxu0
        %v842 = vadd.f32 %v516, %v841
        %843 = vdwg.mxu0
        %844 = vmatprep.subr.bf16.mxu0 %v615
        %845 = vmatpush1.bf16.msra.mxu0 %v614
        %846 = vmatprep.subr.bf16.mxu0 %v619
        %847 = vmatpush1.bf16.msra.mxu0 %v618
        %848 = vmatprep.subr.bf16.mxu0 0
        %849 = vmatpush1.bf16.msra.mxu0 0
        %850 = vmatprep.subr.bf16.mxu0 0
        %851 = vmatpush1.bf16.msra.mxu0 0
        %852 = vmatprep.subr.bf16.mxu0 0
        %853 = vmatpush1.bf16.msra.mxu0 0
        %854 = vmatprep.subr.bf16.mxu0 0
        %855 = vmatpush1.bf16.msra.mxu0 0
        %856 = vmatprep.subr.bf16.mxu0 0
        %857 = vmatpush1.bf16.msra.mxu0 0
        %858 = vmatprep.subr.bf16.mxu0 0
        %859 = vmatpush1.bf16.msra.mxu0 0
        %860 = vmatprep.subr.bf16.mxu0 0
        %861 = vmatpush1.bf16.msra.mxu0 0
        %862 = vmatprep.subr.bf16.mxu0 0
        %863 = vmatpush1.bf16.msra.mxu0 0
        %864 = vmatprep.subr.bf16.mxu0 0
        %865 = vmatpush1.bf16.msra.mxu0 0
        %866 = vmatprep.subr.bf16.mxu0 0
        %867 = vmatpush1.bf16.msra.mxu0 0
        %868 = vmatprep.subr.bf16.mxu0 0
        %869 = vmatpush1.bf16.msra.mxu0 0
        %870 = vmatprep.subr.bf16.mxu0 0
        %871 = vmatpush1.bf16.msra.mxu0 0
        %872 = vmatprep.subr.bf16.mxu0 0
        %873 = vmatpush1.bf16.msra.mxu0 0
        %874 = vmatprep.subr.bf16.mxu0 0
        %875 = vmatpush1.bf16.msra.mxu0 0
        %876 = vmatprep.mubr.bf16.mxu0 0
        %877 = vmatmul.mubr.bf16.gmra.mrb[0].mxu0 %v630
        %v878 = vpop.f32.mrb[0].mxu0
        %v879 = vadd.f32 %v381, %v878
        %v880 = vpop.f32.mrb[0].mxu0
        %v881 = vadd.f32 %v381, %v880
        %v882 = vpop.f32.mrb[0].mxu0
        %v883 = vadd.f32 %v386, %v882
        %v884 = vpop.f32.mrb[0].mxu0
        %v885 = vadd.f32 %v386, %v884
        %886 = vmatprep.mubr.bf16.mxu0 0
        %887 = vmatmul.mubr.bf16.gmra.mrb[0].mxu0 %v633
        %v888 = vpop.f32.mrb[0].mxu0
        %v889 = vadd.f32 %v391, %v888
        %v890 = vpop.f32.mrb[0].mxu0
        %v891 = vadd.f32 %v391, %v890
        %v892 = vpop.f32.mrb[0].mxu0
        %v893 = vadd.f32 %v396, %v892
        %v894 = vpop.f32.mrb[0].mxu0
        %v895 = vadd.f32 %v396, %v894
        %896 = vmatprep.mubr.bf16.mxu0 0
        %897 = vmatmul.mubr.bf16.gmra.mrb[0].mxu0 %v636
        %v898 = vpop.f32.mrb[0].mxu0
        %v899 = vadd.f32 %v401, %v898
        %v900 = vpop.f32.mrb[0].mxu0
        %v901 = vadd.f32 %v401, %v900
        %v902 = vpop.f32.mrb[0].mxu0
        %v903 = vadd.f32 %v406, %v902
        %v904 = vpop.f32.mrb[0].mxu0
        %v905 = vadd.f32 %v406, %v904
        %906 = vmatprep.mubr.bf16.mxu0 0
        %907 = vmatmul.mubr.bf16.gmra.mrb[0].mxu0 %v639
        %v908 = vpop.f32.mrb[0].mxu0
        %v909 = vadd.f32 %v411, %v908
        %v910 = vpop.f32.mrb[0].mxu0
        %v911 = vadd.f32 %v411, %v910
        %v912 = vpop.f32.mrb[0].mxu0
        %v913 = vadd.f32 %v416, %v912
        %v914 = vpop.f32.mrb[0].mxu0
        %v915 = vadd.f32 %v416, %v914
        %916 = vmatprep.mubr.bf16.mxu0 0
        %917 = vmatmul.mubr.bf16.gmra.mrb[0].mxu0 %v642
        %v918 = vpop.f32.mrb[0].mxu0
        %v919 = vadd.f32 %v421, %v918
        %v920 = vpop.f32.mrb[0].mxu0
        %v921 = vadd.f32 %v421, %v920
        %v922 = vpop.f32.mrb[0].mxu0
        %v923 = vadd.f32 %v426, %v922
        %v924 = vpop.f32.mrb[0].mxu0
        %v925 = vadd.f32 %v426, %v924
        %926 = vmatprep.mubr.bf16.mxu0 0
        %927 = vmatmul.mubr.bf16.gmra.mrb[0].mxu0 %v645
        %v928 = vpop.f32.mrb[0].mxu0
        %v929 = vadd.f32 %v431, %v928
        %v930 = vpop.f32.mrb[0].mxu0
        %v931 = vadd.f32 %v431, %v930
        %v932 = vpop.f32.mrb[0].mxu0
        %v933 = vadd.f32 %v436, %v932
        %v934 = vpop.f32.mrb[0].mxu0
        %v935 = vadd.f32 %v436, %v934
        %936 = vmatprep.mubr.bf16.mxu0 0
        %937 = vmatmul.mubr.bf16.gmra.mrb[0].mxu0 %v648
        %v938 = vpop.f32.mrb[0].mxu0
        %v939 = vadd.f32 %v441, %v938
        %v940 = vpop.f32.mrb[0].mxu0
        %v941 = vadd.f32 %v441, %v940
        %v942 = vpop.f32.mrb[0].mxu0
        %v943 = vadd.f32 %v446, %v942
        %v944 = vpop.f32.mrb[0].mxu0
        %v945 = vadd.f32 %v446, %v944
        %946 = vmatprep.mubr.bf16.mxu0 0
        %947 = vmatmul.mubr.bf16.gmra.mrb[0].mxu0 %v651
        %v948 = vpop.f32.mrb[0].mxu0
        %v949 = vadd.f32 %v451, %v948
        %v950 = vpop.f32.mrb[0].mxu0
        %v951 = vadd.f32 %v451, %v950
        %v952 = vpop.f32.mrb[0].mxu0
        %v953 = vadd.f32 %v456, %v952
        %v954 = vpop.f32.mrb[0].mxu0
        %v955 = vadd.f32 %v456, %v954
        %956 = vmatprep.mubr.bf16.mxu0 0
        %957 = vmatmul.mubr.bf16.gmra.mrb[0].mxu0 %v654
        %v958 = vpop.f32.mrb[0].mxu0
        %v959 = vadd.f32 %v461, %v958
        %v960 = vpop.f32.mrb[0].mxu0
        %v961 = vadd.f32 %v461, %v960
        %v962 = vpop.f32.mrb[0].mxu0
        %v963 = vadd.f32 %v466, %v962
        %v964 = vpop.f32.mrb[0].mxu0
        %v965 = vadd.f32 %v466, %v964
        %966 = vmatprep.mubr.bf16.mxu0 0
        %967 = vmatmul.mubr.bf16.gmra.mrb[0].mxu0 %v657
        %v968 = vpop.f32.mrb[0].mxu0
        %v969 = vadd.f32 %v471, %v968
        %v970 = vpop.f32.mrb[0].mxu0
        %v971 = vadd.f32 %v471, %v970
        %v972 = vpop.f32.mrb[0].mxu0
        %v973 = vadd.f32 %v476, %v972
        %v974 = vpop.f32.mrb[0].mxu0
        %v975 = vadd.f32 %v476, %v974
        %976 = vmatprep.mubr.bf16.mxu0 0
        %977 = vmatmul.mubr.bf16.gmra.mrb[0].mxu0 %v660
        %v978 = vpop.f32.mrb[0].mxu0
        %v979 = vadd.f32 %v481, %v978
        %v980 = vpop.f32.mrb[0].mxu0
        %v981 = vadd.f32 %v481, %v980
        %v982 = vpop.f32.mrb[0].mxu0
        %v983 = vadd.f32 %v486, %v982
        %v984 = vpop.f32.mrb[0].mxu0
        %v985 = vadd.f32 %v486, %v984
        %986 = vmatprep.mubr.bf16.mxu0 0
        %987 = vmatmul.mubr.bf16.gmra.mrb[0].mxu0 %v663
        %v988 = vpop.f32.mrb[0].mxu0
        %v989 = vadd.f32 %v491, %v988
        %v990 = vpop.f32.mrb[0].mxu0
        %v991 = vadd.f32 %v491, %v990
        %v992 = vpop.f32.mrb[0].mxu0
        %v993 = vadd.f32 %v496, %v992
        %v994 = vpop.f32.mrb[0].mxu0
        %v995 = vadd.f32 %v496, %v994
        %996 = vmatprep.mubr.bf16.mxu0 0
        %997 = vmatmul.mubr.bf16.gmra.mrb[0].mxu0 %v666
        %v998 = vpop.f32.mrb[0].mxu0
        %v999 = vadd.f32 %v501, %v998
        %v1000 = vpop.f32.mrb[0].mxu0
        %v1001 = vadd.f32 %v501, %v1000
        %v1002 = vpop.f32.mrb[0].mxu0
        %v1003 = vadd.f32 %v506, %v1002
        %v1004 = vpop.f32.mrb[0].mxu0
        %v1005 = vadd.f32 %v506, %v1004
        %1006 = vmatprep.mubr.bf16.mxu0 0
        %1007 = vmatmul.mubr.bf16.gmra.mrb[0].mxu0 %v669
        %v1008 = vpop.f32.mrb[0].mxu0
        %v1009 = vadd.f32 %v511, %v1008
        %v1010 = vpop.f32.mrb[0].mxu0
        %v1011 = vadd.f32 %v511, %v1010
        %v1012 = vpop.f32.mrb[0].mxu0
        %v1013 = vadd.f32 %v516, %v1012
        %v1014 = vpop.f32.mrb[0].mxu0
        %v1015 = vadd.f32 %v516, %v1014
        %1016 = vdwg.mxu0
        %vm1017 = vcmp.ge.f32.partialorder %v706, 0.0
        %vm1018 = vcmp.ge.f32.partialorder %v708, 0.0
        %vm1019 = vcmp.ge.f32.partialorder %v879, 0.0
        %vm1020 = vcmp.ge.f32.partialorder %v881, 0.0
        %vm1021 = vcmp.ge.f32.partialorder %v710, 0.0
        %vm1022 = vcmp.ge.f32.partialorder %v712, 0.0
        %vm1023 = vcmp.ge.f32.partialorder %v883, 0.0
        %vm1024 = vcmp.ge.f32.partialorder %v885, 0.0
        %vm1025 = vcmp.ge.f32.partialorder %v716, 0.0
        %vm1026 = vcmp.ge.f32.partialorder %v718, 0.0
        %vm1027 = vcmp.ge.f32.partialorder %v889, 0.0
        %vm1028 = vcmp.ge.f32.partialorder %v891, 0.0
        %vm1029 = vcmp.ge.f32.partialorder %v720, 0.0
        %vm1030 = vcmp.ge.f32.partialorder %v722, 0.0
        %vm1031 = vcmp.ge.f32.partialorder %v893, 0.0
        %vm1032 = vcmp.ge.f32.partialorder %v895, 0.0
        %vm1033 = vcmp.ge.f32.partialorder %v726, 0.0
        %vm1034 = vcmp.ge.f32.partialorder %v728, 0.0
        %vm1035 = vcmp.ge.f32.partialorder %v899, 0.0
        %vm1036 = vcmp.ge.f32.partialorder %v901, 0.0
        %vm1037 = vcmp.ge.f32.partialorder %v730, 0.0
        %vm1038 = vcmp.ge.f32.partialorder %v732, 0.0
        %vm1039 = vcmp.ge.f32.partialorder %v903, 0.0
        %vm1040 = vcmp.ge.f32.partialorder %v905, 0.0
        %vm1041 = vcmp.ge.f32.partialorder %v736, 0.0
        %vm1042 = vcmp.ge.f32.partialorder %v738, 0.0
        %vm1043 = vcmp.ge.f32.partialorder %v909, 0.0
        %vm1044 = vcmp.ge.f32.partialorder %v911, 0.0
        %vm1045 = vcmp.ge.f32.partialorder %v740, 0.0
        %vm1046 = vcmp.ge.f32.partialorder %v742, 0.0
        %vm1047 = vcmp.ge.f32.partialorder %v913, 0.0
        %vm1048 = vcmp.ge.f32.partialorder %v915, 0.0
        %vm1049 = vcmp.ge.f32.partialorder %v746, 0.0
        %vm1050 = vcmp.ge.f32.partialorder %v748, 0.0
        %vm1051 = vcmp.ge.f32.partialorder %v919, 0.0
        %vm1052 = vcmp.ge.f32.partialorder %v921, 0.0
        %vm1053 = vcmp.ge.f32.partialorder %v750, 0.0
        %vm1054 = vcmp.ge.f32.partialorder %v752, 0.0
        %vm1055 = vcmp.ge.f32.partialorder %v923, 0.0
        %vm1056 = vcmp.ge.f32.partialorder %v925, 0.0
        %vm1057 = vcmp.ge.f32.partialorder %v756, 0.0
        %vm1058 = vcmp.ge.f32.partialorder %v758, 0.0
        %vm1059 = vcmp.ge.f32.partialorder %v929, 0.0
        %vm1060 = vcmp.ge.f32.partialorder %v931, 0.0
        %vm1061 = vcmp.ge.f32.partialorder %v760, 0.0
        %vm1062 = vcmp.ge.f32.partialorder %v762, 0.0
        %vm1063 = vcmp.ge.f32.partialorder %v933, 0.0
        %vm1064 = vcmp.ge.f32.partialorder %v935, 0.0
        %vm1065 = vcmp.ge.f32.partialorder %v766, 0.0
        %vm1066 = vcmp.ge.f32.partialorder %v768, 0.0
        %vm1067 = vcmp.ge.f32.partialorder %v939, 0.0
        %vm1068 = vcmp.ge.f32.partialorder %v941, 0.0
        %vm1069 = vcmp.ge.f32.partialorder %v770, 0.0
        %vm1070 = vcmp.ge.f32.partialorder %v772, 0.0
        %vm1071 = vcmp.ge.f32.partialorder %v943, 0.0
        %vm1072 = vcmp.ge.f32.partialorder %v945, 0.0
        %vm1073 = vcmp.ge.f32.partialorder %v776, 0.0
        %vm1074 = vcmp.ge.f32.partialorder %v778, 0.0
        %vm1075 = vcmp.ge.f32.partialorder %v949, 0.0
        %vm1076 = vcmp.ge.f32.partialorder %v951, 0.0
        %vm1077 = vcmp.ge.f32.partialorder %v780, 0.0
        %vm1078 = vcmp.ge.f32.partialorder %v782, 0.0
        %vm1079 = vcmp.ge.f32.partialorder %v953, 0.0
        %vm1080 = vcmp.ge.f32.partialorder %v955, 0.0
        %vm1081 = vcmp.ge.f32.partialorder %v786, 0.0
        %vm1082 = vcmp.ge.f32.partialorder %v788, 0.0
        %vm1083 = vcmp.ge.f32.partialorder %v959, 0.0
        %vm1084 = vcmp.ge.f32.partialorder %v961, 0.0
        %vm1085 = vcmp.ge.f32.partialorder %v790, 0.0
        %vm1086 = vcmp.ge.f32.partialorder %v792, 0.0
        %vm1087 = vcmp.ge.f32.partialorder %v963, 0.0
        %vm1088 = vcmp.ge.f32.partialorder %v965, 0.0
        %vm1089 = vcmp.ge.f32.partialorder %v796, 0.0
        %vm1090 = vcmp.ge.f32.partialorder %v798, 0.0
        %vm1091 = vcmp.ge.f32.partialorder %v969, 0.0
        %vm1092 = vcmp.ge.f32.partialorder %v971, 0.0
        %vm1093 = vcmp.ge.f32.partialorder %v800, 0.0
        %vm1094 = vcmp.ge.f32.partialorder %v802, 0.0
        %vm1095 = vcmp.ge.f32.partialorder %v973, 0.0
        %vm1096 = vcmp.ge.f32.partialorder %v975, 0.0
        %vm1097 = vcmp.ge.f32.partialorder %v806, 0.0
        %vm1098 = vcmp.ge.f32.partialorder %v808, 0.0
        %vm1099 = vcmp.ge.f32.partialorder %v979, 0.0
        %vm1100 = vcmp.ge.f32.partialorder %v981, 0.0
        %vm1101 = vcmp.ge.f32.partialorder %v810, 0.0
        %vm1102 = vcmp.ge.f32.partialorder %v812, 0.0
        %vm1103 = vcmp.ge.f32.partialorder %v983, 0.0
        %vm1104 = vcmp.ge.f32.partialorder %v985, 0.0
        %vm1105 = vcmp.ge.f32.partialorder %v816, 0.0
        %vm1106 = vcmp.ge.f32.partialorder %v818, 0.0
        %vm1107 = vcmp.ge.f32.partialorder %v989, 0.0
        %vm1108 = vcmp.ge.f32.partialorder %v991, 0.0
        %vm1109 = vcmp.ge.f32.partialorder %v820, 0.0
        %vm1110 = vcmp.ge.f32.partialorder %v822, 0.0
        %vm1111 = vcmp.ge.f32.partialorder %v993, 0.0
        %vm1112 = vcmp.ge.f32.partialorder %v995, 0.0
        %vm1113 = vcmp.ge.f32.partialorder %v826, 0.0
        %vm1114 = vcmp.ge.f32.partialorder %v828, 0.0
        %vm1115 = vcmp.ge.f32.partialorder %v999, 0.0
        %vm1116 = vcmp.ge.f32.partialorder %v1001, 0.0
        %vm1117 = vcmp.ge.f32.partialorder %v830, 0.0
        %vm1118 = vcmp.ge.f32.partialorder %v832, 0.0
        %vm1119 = vcmp.ge.f32.partialorder %v1003, 0.0
        %vm1120 = vcmp.ge.f32.partialorder %v1005, 0.0
        %vm1121 = vcmp.ge.f32.partialorder %v836, 0.0
        %vm1122 = vcmp.ge.f32.partialorder %v838, 0.0
        %vm1123 = vcmp.ge.f32.partialorder %v1009, 0.0
        %vm1124 = vcmp.ge.f32.partialorder %v1011, 0.0
        %vm1125 = vcmp.ge.f32.partialorder %v840, 0.0
        %vm1126 = vcmp.ge.f32.partialorder %v842, 0.0
        %vm1127 = vcmp.ge.f32.partialorder %v1013, 0.0
        %vm1128 = vcmp.ge.f32.partialorder %v1015, 0.0
        %v1129 = vmul.f32 %v706, 0.3
        %v1130 = vmul.f32 %v708, 0.3
        %v1131 = vmul.f32 %v879, 0.3
        %v1132 = vmul.f32 %v881, 0.3
        %v1133 = vmul.f32 %v710, 0.3
        %v1134 = vmul.f32 %v712, 0.3
        %v1135 = vmul.f32 %v883, 0.3
        %v1136 = vmul.f32 %v885, 0.3
        %v1137 = vmul.f32 %v716, 0.3
        %v1138 = vmul.f32 %v718, 0.3
        %v1139 = vmul.f32 %v889, 0.3
        %v1140 = vmul.f32 %v891, 0.3
        %v1141 = vmul.f32 %v720, 0.3
        %v1142 = vmul.f32 %v722, 0.3
        %v1143 = vmul.f32 %v893, 0.3
        %v1144 = vmul.f32 %v895, 0.3
        %v1145 = vmul.f32 %v726, 0.3
        %v1146 = vmul.f32 %v728, 0.3
        %v1147 = vmul.f32 %v899, 0.3
        %v1148 = vmul.f32 %v901, 0.3
        %v1149 = vmul.f32 %v730, 0.3
        %v1150 = vmul.f32 %v732, 0.3
        %v1151 = vmul.f32 %v903, 0.3
        %v1152 = vmul.f32 %v905, 0.3
        %v1153 = vmul.f32 %v736, 0.3
        %v1154 = vmul.f32 %v738, 0.3
        %v1155 = vmul.f32 %v909, 0.3
        %v1156 = vmul.f32 %v911, 0.3
        %v1157 = vmul.f32 %v740, 0.3
        %v1158 = vmul.f32 %v742, 0.3
        %v1159 = vmul.f32 %v913, 0.3
        %v1160 = vmul.f32 %v915, 0.3
        %v1161 = vmul.f32 %v746, 0.3
        %v1162 = vmul.f32 %v748, 0.3
        %v1163 = vmul.f32 %v919, 0.3
        %v1164 = vmul.f32 %v921, 0.3
        %v1165 = vmul.f32 %v750, 0.3
        %v1166 = vmul.f32 %v752, 0.3
        %v1167 = vmul.f32 %v923, 0.3
        %v1168 = vmul.f32 %v925, 0.3
        %v1169 = vmul.f32 %v756, 0.3
        %v1170 = vmul.f32 %v758, 0.3
        %v1171 = vmul.f32 %v929, 0.3
        %v1172 = vmul.f32 %v931, 0.3
        %v1173 = vmul.f32 %v760, 0.3
        %v1174 = vmul.f32 %v762, 0.3
        %v1175 = vmul.f32 %v933, 0.3
        %v1176 = vmul.f32 %v935, 0.3
        %v1177 = vmul.f32 %v766, 0.3
        %v1178 = vmul.f32 %v768, 0.3
        %v1179 = vmul.f32 %v939, 0.3
        %v1180 = vmul.f32 %v941, 0.3
        %v1181 = vmul.f32 %v770, 0.3
        %v1182 = vmul.f32 %v772, 0.3
        %v1183 = vmul.f32 %v943, 0.3
        %v1184 = vmul.f32 %v945, 0.3
        %v1185 = vmul.f32 %v776, 0.3
        %v1186 = vmul.f32 %v778, 0.3
        %v1187 = vmul.f32 %v949, 0.3
        %v1188 = vmul.f32 %v951, 0.3
        %v1189 = vmul.f32 %v780, 0.3
        %v1190 = vmul.f32 %v782, 0.3
        %v1191 = vmul.f32 %v953, 0.3
        %v1192 = vmul.f32 %v955, 0.3
        %v1193 = vmul.f32 %v786, 0.3
        %v1194 = vmul.f32 %v788, 0.3
        %v1195 = vmul.f32 %v959, 0.3
        %v1196 = vmul.f32 %v961, 0.3
        %v1197 = vmul.f32 %v790, 0.3
        %v1198 = vmul.f32 %v792, 0.3
        %v1199 = vmul.f32 %v963, 0.3
        %v1200 = vmul.f32 %v965, 0.3
        %v1201 = vmul.f32 %v796, 0.3
        %v1202 = vmul.f32 %v798, 0.3
        %v1203 = vmul.f32 %v969, 0.3
        %v1204 = vmul.f32 %v971, 0.3
        %v1205 = vmul.f32 %v800, 0.3
        %v1206 = vmul.f32 %v802, 0.3
        %v1207 = vmul.f32 %v973, 0.3
        %v1208 = vmul.f32 %v975, 0.3
        %v1209 = vmul.f32 %v806, 0.3
        %v1210 = vmul.f32 %v808, 0.3
        %v1211 = vmul.f32 %v979, 0.3
        %v1212 = vmul.f32 %v981, 0.3
        %v1213 = vmul.f32 %v810, 0.3
        %v1214 = vmul.f32 %v812, 0.3
        %v1215 = vmul.f32 %v983, 0.3
        %v1216 = vmul.f32 %v985, 0.3
        %v1217 = vmul.f32 %v816, 0.3
        %v1218 = vmul.f32 %v818, 0.3
        %v1219 = vmul.f32 %v989, 0.3
        %v1220 = vmul.f32 %v991, 0.3
        %v1221 = vmul.f32 %v820, 0.3
        %v1222 = vmul.f32 %v822, 0.3
        %v1223 = vmul.f32 %v993, 0.3
        %v1224 = vmul.f32 %v995, 0.3
        %v1225 = vmul.f32 %v826, 0.3
        %v1226 = vmul.f32 %v828, 0.3
        %v1227 = vmul.f32 %v999, 0.3
        %v1228 = vmul.f32 %v1001, 0.3
        %v1229 = vmul.f32 %v830, 0.3
        %v1230 = vmul.f32 %v832, 0.3
        %v1231 = vmul.f32 %v1003, 0.3
        %v1232 = vmul.f32 %v1005, 0.3
        %v1233 = vmul.f32 %v836, 0.3
        %v1234 = vmul.f32 %v838, 0.3
        %v1235 = vmul.f32 %v1009, 0.3
        %v1236 = vmul.f32 %v1011, 0.3
        %v1237 = vmul.f32 %v840, 0.3
        %v1238 = vmul.f32 %v842, 0.3
        %v1239 = vmul.f32 %v1013, 0.3
        %v1240 = vmul.f32 %v1015, 0.3
        %v1241 = vsel %vm1017, %v706, %v1129
        %v1242 = vsel %vm1018, %v708, %v1130
        %v1243 = vsel %vm1019, %v879, %v1131
        %v1244 = vsel %vm1020, %v881, %v1132
        %v1245 = vsel %vm1021, %v710, %v1133
        %v1246 = vsel %vm1022, %v712, %v1134
        %v1247 = vsel %vm1023, %v883, %v1135
        %v1248 = vsel %vm1024, %v885, %v1136
        %v1249 = vsel %vm1025, %v716, %v1137
        %v1250 = vsel %vm1026, %v718, %v1138
        %v1251 = vsel %vm1027, %v889, %v1139
        %v1252 = vsel %vm1028, %v891, %v1140
        %v1253 = vsel %vm1029, %v720, %v1141
        %v1254 = vsel %vm1030, %v722, %v1142
        %v1255 = vsel %vm1031, %v893, %v1143
        %v1256 = vsel %vm1032, %v895, %v1144
        %v1257 = vsel %vm1033, %v726, %v1145
        %v1258 = vsel %vm1034, %v728, %v1146
        %v1259 = vsel %vm1035, %v899, %v1147
        %v1260 = vsel %vm1036, %v901, %v1148
        %v1261 = vsel %vm1037, %v730, %v1149
        %v1262 = vsel %vm1038, %v732, %v1150
        %v1263 = vsel %vm1039, %v903, %v1151
        %v1264 = vsel %vm1040, %v905, %v1152
        %v1265 = vsel %vm1041, %v736, %v1153
        %v1266 = vsel %vm1042, %v738, %v1154
        %v1267 = vsel %vm1043, %v909, %v1155
        %v1268 = vsel %vm1044, %v911, %v1156
        %v1269 = vsel %vm1045, %v740, %v1157
        %v1270 = vsel %vm1046, %v742, %v1158
        %v1271 = vsel %vm1047, %v913, %v1159
        %v1272 = vsel %vm1048, %v915, %v1160
        %v1273 = vsel %vm1049, %v746, %v1161
        %v1274 = vsel %vm1050, %v748, %v1162
        %v1275 = vsel %vm1051, %v919, %v1163
        %v1276 = vsel %vm1052, %v921, %v1164
        %v1277 = vsel %vm1053, %v750, %v1165
        %v1278 = vsel %vm1054, %v752, %v1166
        %v1279 = vsel %vm1055, %v923, %v1167
        %v1280 = vsel %vm1056, %v925, %v1168
        %v1281 = vsel %vm1057, %v756, %v1169
        %v1282 = vsel %vm1058, %v758, %v1170
        %v1283 = vsel %vm1059, %v929, %v1171
        %v1284 = vsel %vm1060, %v931, %v1172
        %v1285 = vsel %vm1061, %v760, %v1173
        %v1286 = vsel %vm1062, %v762, %v1174
        %v1287 = vsel %vm1063, %v933, %v1175
        %v1288 = vsel %vm1064, %v935, %v1176
        %v1289 = vsel %vm1065, %v766, %v1177
        %v1290 = vsel %vm1066, %v768, %v1178
        %v1291 = vsel %vm1067, %v939, %v1179
        %v1292 = vsel %vm1068, %v941, %v1180
        %v1293 = vsel %vm1069, %v770, %v1181
        %v1294 = vsel %vm1070, %v772, %v1182
        %v1295 = vsel %vm1071, %v943, %v1183
        %v1296 = vsel %vm1072, %v945, %v1184
        %v1297 = vsel %vm1073, %v776, %v1185
        %v1298 = vsel %vm1074, %v778, %v1186
        %v1299 = vsel %vm1075, %v949, %v1187
        %v1300 = vsel %vm1076, %v951, %v1188
        %v1301 = vsel %vm1077, %v780, %v1189
        %v1302 = vsel %vm1078, %v782, %v1190
        %v1303 = vsel %vm1079, %v953, %v1191
        %v1304 = vsel %vm1080, %v955, %v1192
        %v1305 = vsel %vm1081, %v786, %v1193
        %v1306 = vsel %vm1082, %v788, %v1194
        %v1307 = vsel %vm1083, %v959, %v1195
        %v1308 = vsel %vm1084, %v961, %v1196
        %v1309 = vsel %vm1085, %v790, %v1197
        %v1310 = vsel %vm1086, %v792, %v1198
        %v1311 = vsel %vm1087, %v963, %v1199
        %v1312 = vsel %vm1088, %v965, %v1200
        %v1313 = vsel %vm1089, %v796, %v1201
        %v1314 = vsel %vm1090, %v798, %v1202
        %v1315 = vsel %vm1091, %v969, %v1203
        %v1316 = vsel %vm1092, %v971, %v1204
        %v1317 = vsel %vm1093, %v800, %v1205
        %v1318 = vsel %vm1094, %v802, %v1206
        %v1319 = vsel %vm1095, %v973, %v1207
        %v1320 = vsel %vm1096, %v975, %v1208
        %v1321 = vsel %vm1097, %v806, %v1209
        %v1322 = vsel %vm1098, %v808, %v1210
        %v1323 = vsel %vm1099, %v979, %v1211
        %v1324 = vsel %vm1100, %v981, %v1212
        %v1325 = vsel %vm1101, %v810, %v1213
        %v1326 = vsel %vm1102, %v812, %v1214
        %v1327 = vsel %vm1103, %v983, %v1215
        %v1328 = vsel %vm1104, %v985, %v1216
        %v1329 = vsel %vm1105, %v816, %v1217
        %v1330 = vsel %vm1106, %v818, %v1218
        %v1331 = vsel %vm1107, %v989, %v1219
        %v1332 = vsel %vm1108, %v991, %v1220
        %v1333 = vsel %vm1109, %v820, %v1221
        %v1334 = vsel %vm1110, %v822, %v1222
        %v1335 = vsel %vm1111, %v993, %v1223
        %v1336 = vsel %vm1112, %v995, %v1224
        %v1337 = vsel %vm1113, %v826, %v1225
        %v1338 = vsel %vm1114, %v828, %v1226
        %v1339 = vsel %vm1115, %v999, %v1227
        %v1340 = vsel %vm1116, %v1001, %v1228
        %v1341 = vsel %vm1117, %v830, %v1229
        %v1342 = vsel %vm1118, %v832, %v1230
        %v1343 = vsel %vm1119, %v1003, %v1231
        %v1344 = vsel %vm1120, %v1005, %v1232
        %v1345 = vsel %vm1121, %v836, %v1233
        %v1346 = vsel %vm1122, %v838, %v1234
        %v1347 = vsel %vm1123, %v1009, %v1235
        %v1348 = vsel %vm1124, %v1011, %v1236
        %v1349 = vsel %vm1125, %v840, %v1237
        %v1350 = vsel %vm1126, %v842, %v1238
        %v1351 = vsel %vm1127, %v1013, %v1239
        %v1352 = vsel %vm1128, %v1015, %v1240
        %v1353 = vpack.c.bf16 %v1245, %v1241
        %v1354 = vpack.c.bf16 %v1246, %v1242
        %v1355 = vpack.c.bf16 %v1247, %v1243
        %v1356 = vpack.c.bf16 %v1248, %v1244
        %v1357 = vpack.c.bf16 %v1253, %v1249
        %v1358 = vpack.c.bf16 %v1254, %v1250
        %v1359 = vpack.c.bf16 %v1255, %v1251
        %v1360 = vpack.c.bf16 %v1256, %v1252
        %v1361 = vpack.c.bf16 %v1261, %v1257
        %v1362 = vpack.c.bf16 %v1262, %v1258
        %v1363 = vpack.c.bf16 %v1263, %v1259
        %v1364 = vpack.c.bf16 %v1264, %v1260
        %v1365 = vpack.c.bf16 %v1269, %v1265
        %v1366 = vpack.c.bf16 %v1270, %v1266
        %v1367 = vpack.c.bf16 %v1271, %v1267
        %v1368 = vpack.c.bf16 %v1272, %v1268
        %v1369 = vpack.c.bf16 %v1277, %v1273
        %v1370 = vpack.c.bf16 %v1278, %v1274
        %v1371 = vpack.c.bf16 %v1279, %v1275
        %v1372 = vpack.c.bf16 %v1280, %v1276
        %v1373 = vpack.c.bf16 %v1285, %v1281
        %v1374 = vpack.c.bf16 %v1286, %v1282
        %v1375 = vpack.c.bf16 %v1287, %v1283
        %v1376 = vpack.c.bf16 %v1288, %v1284
        %v1377 = vpack.c.bf16 %v1293, %v1289
        %v1378 = vpack.c.bf16 %v1294, %v1290
        %v1379 = vpack.c.bf16 %v1295, %v1291
        %v1380 = vpack.c.bf16 %v1296, %v1292
        %v1381 = vpack.c.bf16 %v1301, %v1297
        %v1382 = vpack.c.bf16 %v1302, %v1298
        %v1383 = vpack.c.bf16 %v1303, %v1299
        %v1384 = vpack.c.bf16 %v1304, %v1300
        %v1385 = vpack.c.bf16 %v1309, %v1305
        %v1386 = vpack.c.bf16 %v1310, %v1306
        %v1387 = vpack.c.bf16 %v1311, %v1307
        %v1388 = vpack.c.bf16 %v1312, %v1308
        %v1389 = vpack.c.bf16 %v1317, %v1313
        %v1390 = vpack.c.bf16 %v1318, %v1314
        %v1391 = vpack.c.bf16 %v1319, %v1315
        %v1392 = vpack.c.bf16 %v1320, %v1316
        %v1393 = vpack.c.bf16 %v1325, %v1321
        %v1394 = vpack.c.bf16 %v1326, %v1322
        %v1395 = vpack.c.bf16 %v1327, %v1323
        %v1396 = vpack.c.bf16 %v1328, %v1324
        %v1397 = vpack.c.bf16 %v1333, %v1329
        %v1398 = vpack.c.bf16 %v1334, %v1330
        %v1399 = vpack.c.bf16 %v1335, %v1331
        %v1400 = vpack.c.bf16 %v1336, %v1332
        %v1401 = vpack.c.bf16 %v1341, %v1337
        %v1402 = vpack.c.bf16 %v1342, %v1338
        %v1403 = vpack.c.bf16 %v1343, %v1339
        %v1404 = vpack.c.bf16 %v1344, %v1340
        %v1405 = vpack.c.bf16 %v1349, %v1345
        %v1406 = vpack.c.bf16 %v1350, %v1346
        %v1407 = vpack.c.bf16 %v1351, %v1347
        %v1408 = vpack.c.bf16 %v1352, %v1348
        %v1409 = vld [vmem:[%s3] sm:$0xff]
        %v1410 = vld [vmem:[%s3 + $0x8] sm:$0xff]
        %v1411 = vld [vmem:[%s3 + $0x10] sm:$0xff]
        %v1412 = vld [vmem:[%s3 + $0x18] sm:$0xff]
        %v1413 = vld [vmem:[%s3 + $0x20] sm:$0xff]
        %v1414 = vld [vmem:[%s3 + $0x28] sm:$0xff]
        %v1415 = vld [vmem:[%s3 + $0x30] sm:$0xff]
        %v1416 = vld [vmem:[%s3 + $0x38] sm:$0xff]
        %v1417 = vld [vmem:[%s3 + $0x40] sm:$0xff]
        %v1418 = vld [vmem:[%s3 + $0x48] sm:$0xff]
        %v1419 = vld [vmem:[%s3 + $0x50] sm:$0xff]
        %v1420 = vld [vmem:[%s3 + $0x58] sm:$0xff]
        %v1421 = vld [vmem:[%s3 + $0x60] sm:$0xff]
        %v1422 = vld [vmem:[%s3 + $0x68] sm:$0xff]
        %v1423 = vld [vmem:[%s3 + $0x70] sm:$0xff]
        %v1424 = vld [vmem:[%s3 + $0x78] sm:$0xff]
        %v1425 = vld [vmem:[%s3 + $0x80] sm:$0xff]
        %v1426 = vld [vmem:[%s3 + $0x88] sm:$0xff]
        %v1427 = vld [vmem:[%s3 + $0x90] sm:$0xff]
        %v1428 = vld [vmem:[%s3 + $0x98] sm:$0xff]
        %v1429 = vld [vmem:[%s3 + $0xa0] sm:$0xff]
        %v1430 = vld [vmem:[%s3 + $0xa8] sm:$0xff]
        %v1431 = vld [vmem:[%s3 + $0xb0] sm:$0xff]
        %v1432 = vld [vmem:[%s3 + $0xb8] sm:$0xff]
        %v1433 = vld [vmem:[%s3 + $0xc0] sm:$0xff]
        %v1434 = vld [vmem:[%s3 + $0xc8] sm:$0xff]
        %v1435 = vld [vmem:[%s3 + $0xd0] sm:$0xff]
        %v1436 = vld [vmem:[%s3 + $0xd8] sm:$0xff]
        %v1437 = vld [vmem:[%s4] sm:$0xff]
        %v1438 = vld [vmem:[%s4 + $0x8] sm:$0xff]
        %v1439 = vld [vmem:[%s4 + $0x10] sm:$0xff]
        %v1440 = vld [vmem:[%s4 + $0x18] sm:$0xff]
        %v1441 = vld [vmem:[%s4 + $0x20] sm:$0xff]
        %v1442 = vld [vmem:[%s4 + $0x28] sm:$0xff]
        %v1443 = vld [vmem:[%s4 + $0x30] sm:$0xff]
        %v1444 = vld [vmem:[%s4 + $0x38] sm:$0xff]
        %v1445 = vld [vmem:[%s4 + $0x40] sm:$0xff]
        %v1446 = vld [vmem:[%s4 + $0x48] sm:$0xff]
        %v1447 = vld [vmem:[%s4 + $0x50] sm:$0xff]
        %v1448 = vld [vmem:[%s4 + $0x58] sm:$0xff]
        %v1449 = vld [vmem:[%s4 + $0x60] sm:$0xff]
        %v1450 = vld [vmem:[%s4 + $0x68] sm:$0xff]
        %v1451 = vld [vmem:[%s4 + $0x70] sm:$0xff]
        %v1452 = vld [vmem:[%s4 + $0x78] sm:$0xff]
        %v1453 = vld [vmem:[%s4 + $0x80] sm:$0xff]
        %v1454 = vld [vmem:[%s4 + $0x88] sm:$0xff]
        %v1455 = vld [vmem:[%s4 + $0x90] sm:$0xff]
        %v1456 = vld [vmem:[%s4 + $0x98] sm:$0xff]
        %v1457 = vld [vmem:[%s4 + $0xa0] sm:$0xff]
        %v1458 = vld [vmem:[%s4 + $0xa8] sm:$0xff]
        %v1459 = vld [vmem:[%s4 + $0xb0] sm:$0xff]
        %v1460 = vld [vmem:[%s4 + $0xb8] sm:$0xff]
        %v1461 = vld [vmem:[%s4 + $0xc0] sm:$0xff]
        %v1462 = vld [vmem:[%s4 + $0xc8] sm:$0xff]
        %v1463 = vld [vmem:[%s4 + $0xd0] sm:$0xff]
        %v1464 = vld [vmem:[%s4 + $0xd8] sm:$0xff]
        %1466 = vset.pattern.permute.xlu0 0
        %1467 = vperm.xlu0 %1466, %v1437
        %v1468 = vpop.permute.xlu0 %1467
        %1471 = vset.pattern.permute.xlu0 0
        %1472 = vperm.xlu0 %1471, %v1438
        %v1473 = vpop.permute.xlu0 %1472
        %1476 = vset.pattern.permute.xlu0 0
        %1477 = vperm.xlu0 %1476, %v1439
        %v1478 = vpop.permute.xlu0 %1477
        %1481 = vset.pattern.permute.xlu0 0
        %1482 = vperm.xlu0 %1481, %v1440
        %v1483 = vpop.permute.xlu0 %1482
        %1486 = vset.pattern.permute.xlu0 0
        %1487 = vperm.xlu0 %1486, %v1441
        %v1488 = vpop.permute.xlu0 %1487
        %1491 = vset.pattern.permute.xlu0 0
        %1492 = vperm.xlu0 %1491, %v1442
        %v1493 = vpop.permute.xlu0 %1492
        %1496 = vset.pattern.permute.xlu0 0
        %1497 = vperm.xlu0 %1496, %v1443
        %v1498 = vpop.permute.xlu0 %1497
        %1501 = vset.pattern.permute.xlu0 0
        %1502 = vperm.xlu0 %1501, %v1444
        %v1503 = vpop.permute.xlu0 %1502
        %1506 = vset.pattern.permute.xlu0 0
        %1507 = vperm.xlu0 %1506, %v1445
        %v1508 = vpop.permute.xlu0 %1507
        %1511 = vset.pattern.permute.xlu0 0
        %1512 = vperm.xlu0 %1511, %v1446
        %v1513 = vpop.permute.xlu0 %1512
        %1516 = vset.pattern.permute.xlu0 0
        %1517 = vperm.xlu0 %1516, %v1447
        %v1518 = vpop.permute.xlu0 %1517
        %1521 = vset.pattern.permute.xlu0 0
        %1522 = vperm.xlu0 %1521, %v1448
        %v1523 = vpop.permute.xlu0 %1522
        %1526 = vset.pattern.permute.xlu0 0
        %1527 = vperm.xlu0 %1526, %v1449
        %v1528 = vpop.permute.xlu0 %1527
        %1531 = vset.pattern.permute.xlu0 0
        %1532 = vperm.xlu0 %1531, %v1450
        %v1533 = vpop.permute.xlu0 %1532
        %1536 = vset.pattern.permute.xlu0 0
        %1537 = vperm.xlu0 %1536, %v1451
        %v1538 = vpop.permute.xlu0 %1537
        %1541 = vset.pattern.permute.xlu0 0
        %1542 = vperm.xlu0 %1541, %v1452
        %v1543 = vpop.permute.xlu0 %1542
        %1546 = vset.pattern.permute.xlu0 0
        %1547 = vperm.xlu0 %1546, %v1453
        %v1548 = vpop.permute.xlu0 %1547
        %1551 = vset.pattern.permute.xlu0 0
        %1552 = vperm.xlu0 %1551, %v1454
        %v1553 = vpop.permute.xlu0 %1552
        %1556 = vset.pattern.permute.xlu0 0
        %1557 = vperm.xlu0 %1556, %v1455
        %v1558 = vpop.permute.xlu0 %1557
        %1561 = vset.pattern.permute.xlu0 0
        %1562 = vperm.xlu0 %1561, %v1456
        %v1563 = vpop.permute.xlu0 %1562
        %1566 = vset.pattern.permute.xlu0 0
        %1567 = vperm.xlu0 %1566, %v1457
        %v1568 = vpop.permute.xlu0 %1567
        %1571 = vset.pattern.permute.xlu0 0
        %1572 = vperm.xlu0 %1571, %v1458
        %v1573 = vpop.permute.xlu0 %1572
        %1576 = vset.pattern.permute.xlu0 0
        %1577 = vperm.xlu0 %1576, %v1459
        %v1578 = vpop.permute.xlu0 %1577
        %1581 = vset.pattern.permute.xlu0 0
        %1582 = vperm.xlu0 %1581, %v1460
        %v1583 = vpop.permute.xlu0 %1582
        %1586 = vset.pattern.permute.xlu0 0
        %1587 = vperm.xlu0 %1586, %v1461
        %v1588 = vpop.permute.xlu0 %1587
        %1591 = vset.pattern.permute.xlu0 0
        %1592 = vperm.xlu0 %1591, %v1462
        %v1593 = vpop.permute.xlu0 %1592
        %1596 = vset.pattern.permute.xlu0 0
        %1597 = vperm.xlu0 %1596, %v1463
        %v1598 = vpop.permute.xlu0 %1597
        %1601 = vset.pattern.permute.xlu0 0
        %1602 = vperm.xlu0 %1601, %v1464
        %v1603 = vpop.permute.xlu0 %1602
        %v1633 = vunpack.c.l.b16 %v1409
        %v1634 = vunpack.c.h.b16 %v1409
        %v1635 = vunpack.c.l.b16 %v1410
        %v1636 = vunpack.c.h.b16 %v1410
        %v1637 = vunpack.c.l.b16 %v1411
        %v1638 = vunpack.c.h.b16 %v1411
        %v1639 = vunpack.c.l.b16 %v1412
        %v1640 = vunpack.c.h.b16 %v1412
        %v1641 = vunpack.c.l.b16 %v1413
        %v1642 = vunpack.c.h.b16 %v1413
        %v1643 = vunpack.c.l.b16 %v1414
        %v1644 = vunpack.c.h.b16 %v1414
        %v1645 = vunpack.c.l.b16 %v1415
        %v1646 = vunpack.c.h.b16 %v1415
        %v1647 = vunpack.c.l.b16 %v1416
        %v1648 = vunpack.c.h.b16 %v1416
        %v1649 = vunpack.c.l.b16 %v1417
        %v1650 = vunpack.c.h.b16 %v1417
        %v1651 = vunpack.c.l.b16 %v1418
        %v1652 = vunpack.c.h.b16 %v1418
        %v1653 = vunpack.c.l.b16 %v1419
        %v1654 = vunpack.c.h.b16 %v1419
        %v1655 = vunpack.c.l.b16 %v1420
        %v1656 = vunpack.c.h.b16 %v1420
        %v1657 = vunpack.c.l.b16 %v1421
        %v1658 = vunpack.c.h.b16 %v1421
        %v1659 = vunpack.c.l.b16 %v1422
        %v1660 = vunpack.c.h.b16 %v1422
        %v1661 = vunpack.c.l.b16 %v1423
        %v1662 = vunpack.c.h.b16 %v1423
        %v1663 = vunpack.c.l.b16 %v1424
        %v1664 = vunpack.c.h.b16 %v1424
        %v1665 = vunpack.c.l.b16 %v1425
        %v1666 = vunpack.c.h.b16 %v1425
        %v1667 = vunpack.c.l.b16 %v1426
        %v1668 = vunpack.c.h.b16 %v1426
        %v1669 = vunpack.c.l.b16 %v1427
        %v1670 = vunpack.c.h.b16 %v1427
        %v1671 = vunpack.c.l.b16 %v1428
        %v1672 = vunpack.c.h.b16 %v1428
        %v1673 = vunpack.c.l.b16 %v1429
        %v1674 = vunpack.c.h.b16 %v1429
        %v1675 = vunpack.c.l.b16 %v1430
        %v1676 = vunpack.c.h.b16 %v1430
        %v1677 = vunpack.c.l.b16 %v1431
        %v1678 = vunpack.c.h.b16 %v1431
        %v1679 = vunpack.c.l.b16 %v1432
        %v1680 = vunpack.c.h.b16 %v1432
        %v1681 = vunpack.c.l.b16 %v1433
        %v1682 = vunpack.c.h.b16 %v1433
        %v1683 = vunpack.c.l.b16 %v1434
        %v1684 = vunpack.c.h.b16 %v1434
        %v1685 = vunpack.c.l.b16 %v1435
        %v1686 = vunpack.c.h.b16 %v1435
        %v1687 = vunpack.c.l.b16 %v1436
        %v1688 = vunpack.c.h.b16 %v1436
        %v1689 = vpack.c.b16 %v1635, %v1633
        %v1690 = vpack.c.b16 %v1636, %v1634
        %v1691 = vpack.c.b16 %v1639, %v1637
        %v1692 = vpack.c.b16 %v1640, %v1638
        %v1693 = vpack.c.b16 %v1643, %v1641
        %v1694 = vpack.c.b16 %v1644, %v1642
        %v1695 = vpack.c.b16 %v1647, %v1645
        %v1696 = vpack.c.b16 %v1648, %v1646
        %v1697 = vpack.c.b16 %v1651, %v1649
        %v1698 = vpack.c.b16 %v1652, %v1650
        %v1699 = vpack.c.b16 %v1655, %v1653
        %v1700 = vpack.c.b16 %v1656, %v1654
        %v1701 = vpack.c.b16 %v1659, %v1657
        %v1702 = vpack.c.b16 %v1660, %v1658
        %v1703 = vpack.c.b16 %v1663, %v1661
        %v1704 = vpack.c.b16 %v1664, %v1662
        %v1705 = vpack.c.b16 %v1667, %v1665
        %v1706 = vpack.c.b16 %v1668, %v1666
        %v1707 = vpack.c.b16 %v1671, %v1669
        %v1708 = vpack.c.b16 %v1672, %v1670
        %v1709 = vpack.c.b16 %v1675, %v1673
        %v1710 = vpack.c.b16 %v1676, %v1674
        %v1711 = vpack.c.b16 %v1679, %v1677
        %v1712 = vpack.c.b16 %v1680, %v1678
        %v1713 = vpack.c.b16 %v1683, %v1681
        %v1714 = vpack.c.b16 %v1684, %v1682
        %v1715 = vpack.c.b16 %v1687, %v1685
        %v1716 = vpack.c.b16 %v1688, %v1686
        %vm1731 = vcmask 785408
        %v1733 = vsel %vm1731, %v1690, 0
        %v1736 = vsel %vm1731, %v1692, 0
        %v1739 = vsel %vm1731, %v1694, 0
        %v1742 = vsel %vm1731, %v1696, 0
        %v1745 = vsel %vm1731, %v1698, 0
        %v1748 = vsel %vm1731, %v1700, 0
        %v1751 = vsel %vm1731, %v1702, 0
        %v1754 = vsel %vm1731, %v1704, 0
        %v1757 = vsel %vm1731, %v1706, 0
        %v1760 = vsel %vm1731, %v1708, 0
        %v1763 = vsel %vm1731, %v1710, 0
        %v1766 = vsel %vm1731, %v1712, 0
        %v1769 = vsel %vm1731, %v1714, 0
        %v1772 = vsel %vm1731, %v1716, 0
        %1774 = vmatprep.subr.bf16.mxu0 %v1354
        %1775 = vmatpush1.bf16.msra.mxu0 %v1353
        %1776 = vmatprep.subr.bf16.mxu0 %v1358
        %1777 = vmatpush1.bf16.msra.mxu0 %v1357
        %1778 = vmatprep.subr.bf16.mxu0 %v1362
        %1779 = vmatpush1.bf16.msra.mxu0 %v1361
        %1780 = vmatprep.subr.bf16.mxu0 %v1366
        %1781 = vmatpush1.bf16.msra.mxu0 %v1365
        %1782 = vmatprep.subr.bf16.mxu0 %v1370
        %1783 = vmatpush1.bf16.msra.mxu0 %v1369
        %1784 = vmatprep.subr.bf16.mxu0 %v1374
        %1785 = vmatpush1.bf16.msra.mxu0 %v1373
        %1786 = vmatprep.subr.bf16.mxu0 %v1378
        %1787 = vmatpush1.bf16.msra.mxu0 %v1377
        %1788 = vmatprep.subr.bf16.mxu0 %v1382
        %1789 = vmatpush1.bf16.msra.mxu0 %v1381
        %1790 = vmatprep.subr.bf16.mxu0 %v1386
        %1791 = vmatpush1.bf16.msra.mxu0 %v1385
        %1792 = vmatprep.subr.bf16.mxu0 %v1390
        %1793 = vmatpush1.bf16.msra.mxu0 %v1389
        %1794 = vmatprep.subr.bf16.mxu0 %v1394
        %1795 = vmatpush1.bf16.msra.mxu0 %v1393
        %1796 = vmatprep.subr.bf16.mxu0 %v1398
        %1797 = vmatpush1.bf16.msra.mxu0 %v1397
        %1798 = vmatprep.subr.bf16.mxu0 %v1402
        %1799 = vmatpush1.bf16.msra.mxu0 %v1401
        %1800 = vmatprep.subr.bf16.mxu0 %v1406
        %1801 = vmatpush1.bf16.msra.mxu0 %v1405
        %1802 = vmatprep.subr.bf16.mxu0 0
        %1803 = vmatpush1.bf16.msra.mxu0 0
        %1804 = vmatprep.subr.bf16.mxu0 0
        %1805 = vmatpush1.bf16.msra.mxu0 0
        %1806 = vmatprep.mubr.bf16.mxu0 %v1733
        %1807 = vmatmul.mubr.bf16.gmra.mrb[0].mxu0 %v1689
        %v1808 = vpop.f32.mrb[0].mxu0
        %v1809 = vadd.f32 %v1468, %v1808
        %v1810 = vpop.f32.mrb[0].mxu0
        %v1811 = vadd.f32 %v1468, %v1810
        %v1812 = vpop.f32.mrb[0].mxu0
        %v1813 = vadd.f32 %v1473, %v1812
        %v1814 = vpop.f32.mrb[0].mxu0
        %v1815 = vadd.f32 %v1473, %v1814
        %1816 = vmatprep.mubr.bf16.mxu0 %v1736
        %1817 = vmatmul.mubr.bf16.gmra.mrb[0].mxu0 %v1691
        %v1818 = vpop.f32.mrb[0].mxu0
        %v1819 = vadd.f32 %v1478, %v1818
        %v1820 = vpop.f32.mrb[0].mxu0
        %v1821 = vadd.f32 %v1478, %v1820
        %v1822 = vpop.f32.mrb[0].mxu0
        %v1823 = vadd.f32 %v1483, %v1822
        %v1824 = vpop.f32.mrb[0].mxu0
        %v1825 = vadd.f32 %v1483, %v1824
        %1826 = vmatprep.mubr.bf16.mxu0 %v1739
        %1827 = vmatmul.mubr.bf16.gmra.mrb[0].mxu0 %v1693
        %v1828 = vpop.f32.mrb[0].mxu0
        %v1829 = vadd.f32 %v1488, %v1828
        %v1830 = vpop.f32.mrb[0].mxu0
        %v1831 = vadd.f32 %v1488, %v1830
        %v1832 = vpop.f32.mrb[0].mxu0
        %v1833 = vadd.f32 %v1493, %v1832
        %v1834 = vpop.f32.mrb[0].mxu0
        %v1835 = vadd.f32 %v1493, %v1834
        %1836 = vmatprep.mubr.bf16.mxu0 %v1742
        %1837 = vmatmul.mubr.bf16.gmra.mrb[0].mxu0 %v1695
        %v1838 = vpop.f32.mrb[0].mxu0
        %v1839 = vadd.f32 %v1498, %v1838
        %v1840 = vpop.f32.mrb[0].mxu0
        %v1841 = vadd.f32 %v1498, %v1840
        %v1842 = vpop.f32.mrb[0].mxu0
        %v1843 = vadd.f32 %v1503, %v1842
        %v1844 = vpop.f32.mrb[0].mxu0
        %v1845 = vadd.f32 %v1503, %v1844
        %1846 = vmatprep.mubr.bf16.mxu0 %v1745
        %1847 = vmatmul.mubr.bf16.gmra.mrb[0].mxu0 %v1697
        %v1848 = vpop.f32.mrb[0].mxu0
        %v1849 = vadd.f32 %v1508, %v1848
        %v1850 = vpop.f32.mrb[0].mxu0
        %v1851 = vadd.f32 %v1508, %v1850
        %v1852 = vpop.f32.mrb[0].mxu0
        %v1853 = vadd.f32 %v1513, %v1852
        %v1854 = vpop.f32.mrb[0].mxu0
        %v1855 = vadd.f32 %v1513, %v1854
        %1856 = vmatprep.mubr.bf16.mxu0 %v1748
        %1857 = vmatmul.mubr.bf16.gmra.mrb[0].mxu0 %v1699
        %v1858 = vpop.f32.mrb[0].mxu0
        %v1859 = vadd.f32 %v1518, %v1858
        %v1860 = vpop.f32.mrb[0].mxu0
        %v1861 = vadd.f32 %v1518, %v1860
        %v1862 = vpop.f32.mrb[0].mxu0
        %v1863 = vadd.f32 %v1523, %v1862
        %v1864 = vpop.f32.mrb[0].mxu0
        %v1865 = vadd.f32 %v1523, %v1864
        %1866 = vmatprep.mubr.bf16.mxu0 %v1751
        %1867 = vmatmul.mubr.bf16.gmra.mrb[0].mxu0 %v1701
        %v1868 = vpop.f32.mrb[0].mxu0
        %v1869 = vadd.f32 %v1528, %v1868
        %v1870 = vpop.f32.mrb[0].mxu0
        %v1871 = vadd.f32 %v1528, %v1870
        %v1872 = vpop.f32.mrb[0].mxu0
        %v1873 = vadd.f32 %v1533, %v1872
        %v1874 = vpop.f32.mrb[0].mxu0
        %v1875 = vadd.f32 %v1533, %v1874
        %1876 = vmatprep.mubr.bf16.mxu0 %v1754
        %1877 = vmatmul.mubr.bf16.gmra.mrb[0].mxu0 %v1703
        %v1878 = vpop.f32.mrb[0].mxu0
        %v1879 = vadd.f32 %v1538, %v1878
        %v1880 = vpop.f32.mrb[0].mxu0
        %v1881 = vadd.f32 %v1538, %v1880
        %v1882 = vpop.f32.mrb[0].mxu0
        %v1883 = vadd.f32 %v1543, %v1882
        %v1884 = vpop.f32.mrb[0].mxu0
        %v1885 = vadd.f32 %v1543, %v1884
        %1886 = vmatprep.mubr.bf16.mxu0 %v1757
        %1887 = vmatmul.mubr.bf16.gmra.mrb[0].mxu0 %v1705
        %v1888 = vpop.f32.mrb[0].mxu0
        %v1889 = vadd.f32 %v1548, %v1888
        %v1890 = vpop.f32.mrb[0].mxu0
        %v1891 = vadd.f32 %v1548, %v1890
        %v1892 = vpop.f32.mrb[0].mxu0
        %v1893 = vadd.f32 %v1553, %v1892
        %v1894 = vpop.f32.mrb[0].mxu0
        %v1895 = vadd.f32 %v1553, %v1894
        %1896 = vmatprep.mubr.bf16.mxu0 %v1760
        %1897 = vmatmul.mubr.bf16.gmra.mrb[0].mxu0 %v1707
        %v1898 = vpop.f32.mrb[0].mxu0
        %v1899 = vadd.f32 %v1558, %v1898
        %v1900 = vpop.f32.mrb[0].mxu0
        %v1901 = vadd.f32 %v1558, %v1900
        %v1902 = vpop.f32.mrb[0].mxu0
        %v1903 = vadd.f32 %v1563, %v1902
        %v1904 = vpop.f32.mrb[0].mxu0
        %v1905 = vadd.f32 %v1563, %v1904
        %1906 = vmatprep.mubr.bf16.mxu0 %v1763
        %1907 = vmatmul.mubr.bf16.gmra.mrb[0].mxu0 %v1709
        %v1908 = vpop.f32.mrb[0].mxu0
        %v1909 = vadd.f32 %v1568, %v1908
        %v1910 = vpop.f32.mrb[0].mxu0
        %v1911 = vadd.f32 %v1568, %v1910
        %v1912 = vpop.f32.mrb[0].mxu0
        %v1913 = vadd.f32 %v1573, %v1912
        %v1914 = vpop.f32.mrb[0].mxu0
        %v1915 = vadd.f32 %v1573, %v1914
        %1916 = vmatprep.mubr.bf16.mxu0 %v1766
        %1917 = vmatmul.mubr.bf16.gmra.mrb[0].mxu0 %v1711
        %v1918 = vpop.f32.mrb[0].mxu0
        %v1919 = vadd.f32 %v1578, %v1918
        %v1920 = vpop.f32.mrb[0].mxu0
        %v1921 = vadd.f32 %v1578, %v1920
        %v1922 = vpop.f32.mrb[0].mxu0
        %v1923 = vadd.f32 %v1583, %v1922
        %v1924 = vpop.f32.mrb[0].mxu0
        %v1925 = vadd.f32 %v1583, %v1924
        %1926 = vmatprep.mubr.bf16.mxu0 %v1769
        %1927 = vmatmul.mubr.bf16.gmra.mrb[0].mxu0 %v1713
        %v1928 = vpop.f32.mrb[0].mxu0
        %v1929 = vadd.f32 %v1588, %v1928
        %v1930 = vpop.f32.mrb[0].mxu0
        %v1931 = vadd.f32 %v1588, %v1930
        %v1932 = vpop.f32.mrb[0].mxu0
        %v1933 = vadd.f32 %v1593, %v1932
        %v1934 = vpop.f32.mrb[0].mxu0
        %v1935 = vadd.f32 %v1593, %v1934
        %1936 = vmatprep.mubr.bf16.mxu0 %v1772
        %1937 = vmatmul.mubr.bf16.gmra.mrb[0].mxu0 %v1715
        %v1938 = vpop.f32.mrb[0].mxu0
        %v1939 = vadd.f32 %v1598, %v1938
        %v1940 = vpop.f32.mrb[0].mxu0
        %v1941 = vadd.f32 %v1598, %v1940
        %v1942 = vpop.f32.mrb[0].mxu0
        %v1943 = vadd.f32 %v1603, %v1942
        %v1944 = vpop.f32.mrb[0].mxu0
        %v1945 = vadd.f32 %v1603, %v1944
        %1946 = vdwg.mxu0
        %1947 = vmatprep.subr.bf16.mxu0 %v1356
        %1948 = vmatpush1.bf16.msra.mxu0 %v1355
        %1949 = vmatprep.subr.bf16.mxu0 %v1360
        %1950 = vmatpush1.bf16.msra.mxu0 %v1359
        %1951 = vmatprep.subr.bf16.mxu0 %v1364
        %1952 = vmatpush1.bf16.msra.mxu0 %v1363
        %1953 = vmatprep.subr.bf16.mxu0 %v1368
        %1954 = vmatpush1.bf16.msra.mxu0 %v1367
        %1955 = vmatprep.subr.bf16.mxu0 %v1372
        %1956 = vmatpush1.bf16.msra.mxu0 %v1371
        %1957 = vmatprep.subr.bf16.mxu0 %v1376
        %1958 = vmatpush1.bf16.msra.mxu0 %v1375
        %1959 = vmatprep.subr.bf16.mxu0 %v1380
        %1960 = vmatpush1.bf16.msra.mxu0 %v1379
        %1961 = vmatprep.subr.bf16.mxu0 %v1384
        %1962 = vmatpush1.bf16.msra.mxu0 %v1383
        %1963 = vmatprep.subr.bf16.mxu0 %v1388
        %1964 = vmatpush1.bf16.msra.mxu0 %v1387
        %1965 = vmatprep.subr.bf16.mxu0 %v1392
        %1966 = vmatpush1.bf16.msra.mxu0 %v1391
        %1967 = vmatprep.subr.bf16.mxu0 %v1396
        %1968 = vmatpush1.bf16.msra.mxu0 %v1395
        %1969 = vmatprep.subr.bf16.mxu0 %v1400
        %1970 = vmatpush1.bf16.msra.mxu0 %v1399
        %1971 = vmatprep.subr.bf16.mxu0 %v1404
        %1972 = vmatpush1.bf16.msra.mxu0 %v1403
        %1973 = vmatprep.subr.bf16.mxu0 %v1408
        %1974 = vmatpush1.bf16.msra.mxu0 %v1407
        %1975 = vmatprep.subr.bf16.mxu0 0
        %1976 = vmatpush1.bf16.msra.mxu0 0
        %1977 = vmatprep.subr.bf16.mxu0 0
        %1978 = vmatpush1.bf16.msra.mxu0 0
        %1979 = vmatprep.mubr.bf16.mxu0 %v1733
        %1980 = vmatmul.mubr.bf16.gmra.mrb[0].mxu0 %v1689
        %v1981 = vpop.f32.mrb[0].mxu0
        %v1982 = vadd.f32 %v1468, %v1981
        %v1983 = vpop.f32.mrb[0].mxu0
        %v1984 = vadd.f32 %v1468, %v1983
        %v1985 = vpop.f32.mrb[0].mxu0
        %v1986 = vadd.f32 %v1473, %v1985
        %v1987 = vpop.f32.mrb[0].mxu0
        %v1988 = vadd.f32 %v1473, %v1987
        %1989 = vmatprep.mubr.bf16.mxu0 %v1736
        %1990 = vmatmul.mubr.bf16.gmra.mrb[0].mxu0 %v1691
        %v1991 = vpop.f32.mrb[0].mxu0
        %v1992 = vadd.f32 %v1478, %v1991
        %v1993 = vpop.f32.mrb[0].mxu0
        %v1994 = vadd.f32 %v1478, %v1993
        %v1995 = vpop.f32.mrb[0].mxu0
        %v1996 = vadd.f32 %v1483, %v1995
        %v1997 = vpop.f32.mrb[0].mxu0
        %v1998 = vadd.f32 %v1483, %v1997
        %1999 = vmatprep.mubr.bf16.mxu0 %v1739
        %2000 = vmatmul.mubr.bf16.gmra.mrb[0].mxu0 %v1693
        %v2001 = vpop.f32.mrb[0].mxu0
        %v2002 = vadd.f32 %v1488, %v2001
        %v2003 = vpop.f32.mrb[0].mxu0
        %v2004 = vadd.f32 %v1488, %v2003
        %v2005 = vpop.f32.mrb[0].mxu0
        %v2006 = vadd.f32 %v1493, %v2005
        %v2007 = vpop.f32.mrb[0].mxu0
        %v2008 = vadd.f32 %v1493, %v2007
        %2009 = vmatprep.mubr.bf16.mxu0 %v1742
        %2010 = vmatmul.mubr.bf16.gmra.mrb[0].mxu0 %v1695
        %v2011 = vpop.f32.mrb[0].mxu0
        %v2012 = vadd.f32 %v1498, %v2011
        %v2013 = vpop.f32.mrb[0].mxu0
        %v2014 = vadd.f32 %v1498, %v2013
        %v2015 = vpop.f32.mrb[0].mxu0
        %v2016 = vadd.f32 %v1503, %v2015
        %v2017 = vpop.f32.mrb[0].mxu0
        %v2018 = vadd.f32 %v1503, %v2017
        %2019 = vmatprep.mubr.bf16.mxu0 %v1745
        %2020 = vmatmul.mubr.bf16.gmra.mrb[0].mxu0 %v1697
        %v2021 = vpop.f32.mrb[0].mxu0
        %v2022 = vadd.f32 %v1508, %v2021
        %v2023 = vpop.f32.mrb[0].mxu0
        %v2024 = vadd.f32 %v1508, %v2023
        %v2025 = vpop.f32.mrb[0].mxu0
        %v2026 = vadd.f32 %v1513, %v2025
        %v2027 = vpop.f32.mrb[0].mxu0
        %v2028 = vadd.f32 %v1513, %v2027
        %2029 = vmatprep.mubr.bf16.mxu0 %v1748
        %2030 = vmatmul.mubr.bf16.gmra.mrb[0].mxu0 %v1699
        %v2031 = vpop.f32.mrb[0].mxu0
        %v2032 = vadd.f32 %v1518, %v2031
        %v2033 = vpop.f32.mrb[0].mxu0
        %v2034 = vadd.f32 %v1518, %v2033
        %v2035 = vpop.f32.mrb[0].mxu0
        %v2036 = vadd.f32 %v1523, %v2035
        %v2037 = vpop.f32.mrb[0].mxu0
        %v2038 = vadd.f32 %v1523, %v2037
        %2039 = vmatprep.mubr.bf16.mxu0 %v1751
        %2040 = vmatmul.mubr.bf16.gmra.mrb[0].mxu0 %v1701
        %v2041 = vpop.f32.mrb[0].mxu0
        %v2042 = vadd.f32 %v1528, %v2041
        %v2043 = vpop.f32.mrb[0].mxu0
        %v2044 = vadd.f32 %v1528, %v2043
        %v2045 = vpop.f32.mrb[0].mxu0
        %v2046 = vadd.f32 %v1533, %v2045
        %v2047 = vpop.f32.mrb[0].mxu0
        %v2048 = vadd.f32 %v1533, %v2047
        %2049 = vmatprep.mubr.bf16.mxu0 %v1754
        %2050 = vmatmul.mubr.bf16.gmra.mrb[0].mxu0 %v1703
        %v2051 = vpop.f32.mrb[0].mxu0
        %v2052 = vadd.f32 %v1538, %v2051
        %v2053 = vpop.f32.mrb[0].mxu0
        %v2054 = vadd.f32 %v1538, %v2053
        %v2055 = vpop.f32.mrb[0].mxu0
        %v2056 = vadd.f32 %v1543, %v2055
        %v2057 = vpop.f32.mrb[0].mxu0
        %v2058 = vadd.f32 %v1543, %v2057
        %2059 = vmatprep.mubr.bf16.mxu0 %v1757
        %2060 = vmatmul.mubr.bf16.gmra.mrb[0].mxu0 %v1705
        %v2061 = vpop.f32.mrb[0].mxu0
        %v2062 = vadd.f32 %v1548, %v2061
        %v2063 = vpop.f32.mrb[0].mxu0
        %v2064 = vadd.f32 %v1548, %v2063
        %v2065 = vpop.f32.mrb[0].mxu0
        %v2066 = vadd.f32 %v1553, %v2065
        %v2067 = vpop.f32.mrb[0].mxu0
        %v2068 = vadd.f32 %v1553, %v2067
        %2069 = vmatprep.mubr.bf16.mxu0 %v1760
        %2070 = vmatmul.mubr.bf16.gmra.mrb[0].mxu0 %v1707
        %v2071 = vpop.f32.mrb[0].mxu0
        %v2072 = vadd.f32 %v1558, %v2071
        %v2073 = vpop.f32.mrb[0].mxu0
        %v2074 = vadd.f32 %v1558, %v2073
        %v2075 = vpop.f32.mrb[0].mxu0
        %v2076 = vadd.f32 %v1563, %v2075
        %v2077 = vpop.f32.mrb[0].mxu0
        %v2078 = vadd.f32 %v1563, %v2077
        %2079 = vmatprep.mubr.bf16.mxu0 %v1763
        %2080 = vmatmul.mubr.bf16.gmra.mrb[0].mxu0 %v1709
        %v2081 = vpop.f32.mrb[0].mxu0
        %v2082 = vadd.f32 %v1568, %v2081
        %v2083 = vpop.f32.mrb[0].mxu0
        %v2084 = vadd.f32 %v1568, %v2083
        %v2085 = vpop.f32.mrb[0].mxu0
        %v2086 = vadd.f32 %v1573, %v2085
        %v2087 = vpop.f32.mrb[0].mxu0
        %v2088 = vadd.f32 %v1573, %v2087
        %2089 = vmatprep.mubr.bf16.mxu0 %v1766
        %2090 = vmatmul.mubr.bf16.gmra.mrb[0].mxu0 %v1711
        %v2091 = vpop.f32.mrb[0].mxu0
        %v2092 = vadd.f32 %v1578, %v2091
        %v2093 = vpop.f32.mrb[0].mxu0
        %v2094 = vadd.f32 %v1578, %v2093
        %v2095 = vpop.f32.mrb[0].mxu0
        %v2096 = vadd.f32 %v1583, %v2095
        %v2097 = vpop.f32.mrb[0].mxu0
        %v2098 = vadd.f32 %v1583, %v2097
        %2099 = vmatprep.mubr.bf16.mxu0 %v1769
        %2100 = vmatmul.mubr.bf16.gmra.mrb[0].mxu0 %v1713
        %v2101 = vpop.f32.mrb[0].mxu0
        %v2102 = vadd.f32 %v1588, %v2101
        %v2103 = vpop.f32.mrb[0].mxu0
        %v2104 = vadd.f32 %v1588, %v2103
        %v2105 = vpop.f32.mrb[0].mxu0
        %v2106 = vadd.f32 %v1593, %v2105
        %v2107 = vpop.f32.mrb[0].mxu0
        %v2108 = vadd.f32 %v1593, %v2107
        %2109 = vmatprep.mubr.bf16.mxu0 %v1772
        %2110 = vmatmul.mubr.bf16.gmra.mrb[0].mxu0 %v1715
        %v2111 = vpop.f32.mrb[0].mxu0
        %v2112 = vadd.f32 %v1598, %v2111
        %v2113 = vpop.f32.mrb[0].mxu0
        %v2114 = vadd.f32 %v1598, %v2113
        %v2115 = vpop.f32.mrb[0].mxu0
        %v2116 = vadd.f32 %v1603, %v2115
        %v2117 = vpop.f32.mrb[0].mxu0
        %v2118 = vadd.f32 %v1603, %v2117
        %2119 = vdwg.mxu0
        %vm2120 = vcmp.ge.f32.partialorder %v1809, 0.0
        %vm2121 = vcmp.ge.f32.partialorder %v1811, 0.0
        %vm2122 = vcmp.ge.f32.partialorder %v1982, 0.0
        %vm2123 = vcmp.ge.f32.partialorder %v1984, 0.0
        %vm2124 = vcmp.ge.f32.partialorder %v1813, 0.0
        %vm2125 = vcmp.ge.f32.partialorder %v1815, 0.0
        %vm2126 = vcmp.ge.f32.partialorder %v1986, 0.0
        %vm2127 = vcmp.ge.f32.partialorder %v1988, 0.0
        %vm2128 = vcmp.ge.f32.partialorder %v1819, 0.0
        %vm2129 = vcmp.ge.f32.partialorder %v1821, 0.0
        %vm2130 = vcmp.ge.f32.partialorder %v1992, 0.0
        %vm2131 = vcmp.ge.f32.partialorder %v1994, 0.0
        %vm2132 = vcmp.ge.f32.partialorder %v1823, 0.0
        %vm2133 = vcmp.ge.f32.partialorder %v1825, 0.0
        %vm2134 = vcmp.ge.f32.partialorder %v1996, 0.0
        %vm2135 = vcmp.ge.f32.partialorder %v1998, 0.0
        %vm2136 = vcmp.ge.f32.partialorder %v1829, 0.0
        %vm2137 = vcmp.ge.f32.partialorder %v1831, 0.0
        %vm2138 = vcmp.ge.f32.partialorder %v2002, 0.0
        %vm2139 = vcmp.ge.f32.partialorder %v2004, 0.0
        %vm2140 = vcmp.ge.f32.partialorder %v1833, 0.0
        %vm2141 = vcmp.ge.f32.partialorder %v1835, 0.0
        %vm2142 = vcmp.ge.f32.partialorder %v2006, 0.0
        %vm2143 = vcmp.ge.f32.partialorder %v2008, 0.0
        %vm2144 = vcmp.ge.f32.partialorder %v1839, 0.0
        %vm2145 = vcmp.ge.f32.partialorder %v1841, 0.0
        %vm2146 = vcmp.ge.f32.partialorder %v2012, 0.0
        %vm2147 = vcmp.ge.f32.partialorder %v2014, 0.0
        %vm2148 = vcmp.ge.f32.partialorder %v1843, 0.0
        %vm2149 = vcmp.ge.f32.partialorder %v1845, 0.0
        %vm2150 = vcmp.ge.f32.partialorder %v2016, 0.0
        %vm2151 = vcmp.ge.f32.partialorder %v2018, 0.0
        %vm2152 = vcmp.ge.f32.partialorder %v1849, 0.0
        %vm2153 = vcmp.ge.f32.partialorder %v1851, 0.0
        %vm2154 = vcmp.ge.f32.partialorder %v2022, 0.0
        %vm2155 = vcmp.ge.f32.partialorder %v2024, 0.0
        %vm2156 = vcmp.ge.f32.partialorder %v1853, 0.0
        %vm2157 = vcmp.ge.f32.partialorder %v1855, 0.0
        %vm2158 = vcmp.ge.f32.partialorder %v2026, 0.0
        %vm2159 = vcmp.ge.f32.partialorder %v2028, 0.0
        %vm2160 = vcmp.ge.f32.partialorder %v1859, 0.0
        %vm2161 = vcmp.ge.f32.partialorder %v1861, 0.0
        %vm2162 = vcmp.ge.f32.partialorder %v2032, 0.0
        %vm2163 = vcmp.ge.f32.partialorder %v2034, 0.0
        %vm2164 = vcmp.ge.f32.partialorder %v1863, 0.0
        %vm2165 = vcmp.ge.f32.partialorder %v1865, 0.0
        %vm2166 = vcmp.ge.f32.partialorder %v2036, 0.0
        %vm2167 = vcmp.ge.f32.partialorder %v2038, 0.0
        %vm2168 = vcmp.ge.f32.partialorder %v1869, 0.0
        %vm2169 = vcmp.ge.f32.partialorder %v1871, 0.0
        %vm2170 = vcmp.ge.f32.partialorder %v2042, 0.0
        %vm2171 = vcmp.ge.f32.partialorder %v2044, 0.0
        %vm2172 = vcmp.ge.f32.partialorder %v1873, 0.0
        %vm2173 = vcmp.ge.f32.partialorder %v1875, 0.0
        %vm2174 = vcmp.ge.f32.partialorder %v2046, 0.0
        %vm2175 = vcmp.ge.f32.partialorder %v2048, 0.0
        %vm2176 = vcmp.ge.f32.partialorder %v1879, 0.0
        %vm2177 = vcmp.ge.f32.partialorder %v1881, 0.0
        %vm2178 = vcmp.ge.f32.partialorder %v2052, 0.0
        %vm2179 = vcmp.ge.f32.partialorder %v2054, 0.0
        %vm2180 = vcmp.ge.f32.partialorder %v1883, 0.0
        %vm2181 = vcmp.ge.f32.partialorder %v1885, 0.0
        %vm2182 = vcmp.ge.f32.partialorder %v2056, 0.0
        %vm2183 = vcmp.ge.f32.partialorder %v2058, 0.0
        %vm2184 = vcmp.ge.f32.partialorder %v1889, 0.0
        %vm2185 = vcmp.ge.f32.partialorder %v1891, 0.0
        %vm2186 = vcmp.ge.f32.partialorder %v2062, 0.0
        %vm2187 = vcmp.ge.f32.partialorder %v2064, 0.0
        %vm2188 = vcmp.ge.f32.partialorder %v1893, 0.0
        %vm2189 = vcmp.ge.f32.partialorder %v1895, 0.0
        %vm2190 = vcmp.ge.f32.partialorder %v2066, 0.0
        %vm2191 = vcmp.ge.f32.partialorder %v2068, 0.0
        %vm2192 = vcmp.ge.f32.partialorder %v1899, 0.0
        %vm2193 = vcmp.ge.f32.partialorder %v1901, 0.0
        %vm2194 = vcmp.ge.f32.partialorder %v2072, 0.0
        %vm2195 = vcmp.ge.f32.partialorder %v2074, 0.0
        %vm2196 = vcmp.ge.f32.partialorder %v1903, 0.0
        %vm2197 = vcmp.ge.f32.partialorder %v1905, 0.0
        %vm2198 = vcmp.ge.f32.partialorder %v2076, 0.0
        %vm2199 = vcmp.ge.f32.partialorder %v2078, 0.0
        %vm2200 = vcmp.ge.f32.partialorder %v1909, 0.0
        %vm2201 = vcmp.ge.f32.partialorder %v1911, 0.0
        %vm2202 = vcmp.ge.f32.partialorder %v2082, 0.0
        %vm2203 = vcmp.ge.f32.partialorder %v2084, 0.0
        %vm2204 = vcmp.ge.f32.partialorder %v1913, 0.0
        %vm2205 = vcmp.ge.f32.partialorder %v1915, 0.0
        %vm2206 = vcmp.ge.f32.partialorder %v2086, 0.0
        %vm2207 = vcmp.ge.f32.partialorder %v2088, 0.0
        %vm2208 = vcmp.ge.f32.partialorder %v1919, 0.0
        %vm2209 = vcmp.ge.f32.partialorder %v1921, 0.0
        %vm2210 = vcmp.ge.f32.partialorder %v2092, 0.0
        %vm2211 = vcmp.ge.f32.partialorder %v2094, 0.0
        %vm2212 = vcmp.ge.f32.partialorder %v1923, 0.0
        %vm2213 = vcmp.ge.f32.partialorder %v1925, 0.0
        %vm2214 = vcmp.ge.f32.partialorder %v2096, 0.0
        %vm2215 = vcmp.ge.f32.partialorder %v2098, 0.0
        %vm2216 = vcmp.ge.f32.partialorder %v1929, 0.0
        %vm2217 = vcmp.ge.f32.partialorder %v1931, 0.0
        %vm2218 = vcmp.ge.f32.partialorder %v2102, 0.0
        %vm2219 = vcmp.ge.f32.partialorder %v2104, 0.0
        %vm2220 = vcmp.ge.f32.partialorder %v1933, 0.0
        %vm2221 = vcmp.ge.f32.partialorder %v1935, 0.0
        %vm2222 = vcmp.ge.f32.partialorder %v2106, 0.0
        %vm2223 = vcmp.ge.f32.partialorder %v2108, 0.0
        %vm2224 = vcmp.ge.f32.partialorder %v1939, 0.0
        %vm2225 = vcmp.ge.f32.partialorder %v1941, 0.0
        %vm2226 = vcmp.ge.f32.partialorder %v2112, 0.0
        %vm2227 = vcmp.ge.f32.partialorder %v2114, 0.0
        %vm2228 = vcmp.ge.f32.partialorder %v1943, 0.0
        %vm2229 = vcmp.ge.f32.partialorder %v1945, 0.0
        %vm2230 = vcmp.ge.f32.partialorder %v2116, 0.0
        %vm2231 = vcmp.ge.f32.partialorder %v2118, 0.0
        %v2232 = vmul.f32 %v1809, 0.3
        %v2233 = vmul.f32 %v1811, 0.3
        %v2234 = vmul.f32 %v1982, 0.3
        %v2235 = vmul.f32 %v1984, 0.3
        %v2236 = vmul.f32 %v1813, 0.3
        %v2237 = vmul.f32 %v1815, 0.3
        %v2238 = vmul.f32 %v1986, 0.3
        %v2239 = vmul.f32 %v1988, 0.3
        %v2240 = vmul.f32 %v1819, 0.3
        %v2241 = vmul.f32 %v1821, 0.3
        %v2242 = vmul.f32 %v1992, 0.3
        %v2243 = vmul.f32 %v1994, 0.3
        %v2244 = vmul.f32 %v1823, 0.3
        %v2245 = vmul.f32 %v1825, 0.3
        %v2246 = vmul.f32 %v1996, 0.3
        %v2247 = vmul.f32 %v1998, 0.3
        %v2248 = vmul.f32 %v1829, 0.3
        %v2249 = vmul.f32 %v1831, 0.3
        %v2250 = vmul.f32 %v2002, 0.3
        %v2251 = vmul.f32 %v2004, 0.3
        %v2252 = vmul.f32 %v1833, 0.3
        %v2253 = vmul.f32 %v1835, 0.3
        %v2254 = vmul.f32 %v2006, 0.3
        %v2255 = vmul.f32 %v2008, 0.3
        %v2256 = vmul.f32 %v1839, 0.3
        %v2257 = vmul.f32 %v1841, 0.3
        %v2258 = vmul.f32 %v2012, 0.3
        %v2259 = vmul.f32 %v2014, 0.3
        %v2260 = vmul.f32 %v1843, 0.3
        %v2261 = vmul.f32 %v1845, 0.3
        %v2262 = vmul.f32 %v2016, 0.3
        %v2263 = vmul.f32 %v2018, 0.3
        %v2264 = vmul.f32 %v1849, 0.3
        %v2265 = vmul.f32 %v1851, 0.3
        %v2266 = vmul.f32 %v2022, 0.3
        %v2267 = vmul.f32 %v2024, 0.3
        %v2268 = vmul.f32 %v1853, 0.3
        %v2269 = vmul.f32 %v1855, 0.3
        %v2270 = vmul.f32 %v2026, 0.3
        %v2271 = vmul.f32 %v2028, 0.3
        %v2272 = vmul.f32 %v1859, 0.3
        %v2273 = vmul.f32 %v1861, 0.3
        %v2274 = vmul.f32 %v2032, 0.3
        %v2275 = vmul.f32 %v2034, 0.3
        %v2276 = vmul.f32 %v1863, 0.3
        %v2277 = vmul.f32 %v1865, 0.3
        %v2278 = vmul.f32 %v2036, 0.3
        %v2279 = vmul.f32 %v2038, 0.3
        %v2280 = vmul.f32 %v1869, 0.3
        %v2281 = vmul.f32 %v1871, 0.3
        %v2282 = vmul.f32 %v2042, 0.3
        %v2283 = vmul.f32 %v2044, 0.3
        %v2284 = vmul.f32 %v1873, 0.3
        %v2285 = vmul.f32 %v1875, 0.3
        %v2286 = vmul.f32 %v2046, 0.3
        %v2287 = vmul.f32 %v2048, 0.3
        %v2288 = vmul.f32 %v1879, 0.3
        %v2289 = vmul.f32 %v1881, 0.3
        %v2290 = vmul.f32 %v2052, 0.3
        %v2291 = vmul.f32 %v2054, 0.3
        %v2292 = vmul.f32 %v1883, 0.3
        %v2293 = vmul.f32 %v1885, 0.3
        %v2294 = vmul.f32 %v2056, 0.3
        %v2295 = vmul.f32 %v2058, 0.3
        %v2296 = vmul.f32 %v1889, 0.3
        %v2297 = vmul.f32 %v1891, 0.3
        %v2298 = vmul.f32 %v2062, 0.3
        %v2299 = vmul.f32 %v2064, 0.3
        %v2300 = vmul.f32 %v1893, 0.3
        %v2301 = vmul.f32 %v1895, 0.3
        %v2302 = vmul.f32 %v2066, 0.3
        %v2303 = vmul.f32 %v2068, 0.3
        %v2304 = vmul.f32 %v1899, 0.3
        %v2305 = vmul.f32 %v1901, 0.3
        %v2306 = vmul.f32 %v2072, 0.3
        %v2307 = vmul.f32 %v2074, 0.3
        %v2308 = vmul.f32 %v1903, 0.3
        %v2309 = vmul.f32 %v1905, 0.3
        %v2310 = vmul.f32 %v2076, 0.3
        %v2311 = vmul.f32 %v2078, 0.3
        %v2312 = vmul.f32 %v1909, 0.3
        %v2313 = vmul.f32 %v1911, 0.3
        %v2314 = vmul.f32 %v2082, 0.3
        %v2315 = vmul.f32 %v2084, 0.3
        %v2316 = vmul.f32 %v1913, 0.3
        %v2317 = vmul.f32 %v1915, 0.3
        %v2318 = vmul.f32 %v2086, 0.3
        %v2319 = vmul.f32 %v2088, 0.3
        %v2320 = vmul.f32 %v1919, 0.3
        %v2321 = vmul.f32 %v1921, 0.3
        %v2322 = vmul.f32 %v2092, 0.3
        %v2323 = vmul.f32 %v2094, 0.3
        %v2324 = vmul.f32 %v1923, 0.3
        %v2325 = vmul.f32 %v1925, 0.3
        %v2326 = vmul.f32 %v2096, 0.3
        %v2327 = vmul.f32 %v2098, 0.3
        %v2328 = vmul.f32 %v1929, 0.3
        %v2329 = vmul.f32 %v1931, 0.3
        %v2330 = vmul.f32 %v2102, 0.3
        %v2331 = vmul.f32 %v2104, 0.3
        %v2332 = vmul.f32 %v1933, 0.3
        %v2333 = vmul.f32 %v1935, 0.3
        %v2334 = vmul.f32 %v2106, 0.3
        %v2335 = vmul.f32 %v2108, 0.3
        %v2336 = vmul.f32 %v1939, 0.3
        %v2337 = vmul.f32 %v1941, 0.3
        %v2338 = vmul.f32 %v2112, 0.3
        %v2339 = vmul.f32 %v2114, 0.3
        %v2340 = vmul.f32 %v1943, 0.3
        %v2341 = vmul.f32 %v1945, 0.3
        %v2342 = vmul.f32 %v2116, 0.3
        %v2343 = vmul.f32 %v2118, 0.3
        %v2344 = vsel %vm2120, %v1809, %v2232
        %v2345 = vsel %vm2121, %v1811, %v2233
        %v2346 = vsel %vm2122, %v1982, %v2234
        %v2347 = vsel %vm2123, %v1984, %v2235
        %v2348 = vsel %vm2124, %v1813, %v2236
        %v2349 = vsel %vm2125, %v1815, %v2237
        %v2350 = vsel %vm2126, %v1986, %v2238
        %v2351 = vsel %vm2127, %v1988, %v2239
        %v2352 = vsel %vm2128, %v1819, %v2240
        %v2353 = vsel %vm2129, %v1821, %v2241
        %v2354 = vsel %vm2130, %v1992, %v2242
        %v2355 = vsel %vm2131, %v1994, %v2243
        %v2356 = vsel %vm2132, %v1823, %v2244
        %v2357 = vsel %vm2133, %v1825, %v2245
        %v2358 = vsel %vm2134, %v1996, %v2246
        %v2359 = vsel %vm2135, %v1998, %v2247
        %v2360 = vsel %vm2136, %v1829, %v2248
        %v2361 = vsel %vm2137, %v1831, %v2249
        %v2362 = vsel %vm2138, %v2002, %v2250
        %v2363 = vsel %vm2139, %v2004, %v2251
        %v2364 = vsel %vm2140, %v1833, %v2252
        %v2365 = vsel %vm2141, %v1835, %v2253
        %v2366 = vsel %vm2142, %v2006, %v2254
        %v2367 = vsel %vm2143, %v2008, %v2255
        %v2368 = vsel %vm2144, %v1839, %v2256
        %v2369 = vsel %vm2145, %v1841, %v2257
        %v2370 = vsel %vm2146, %v2012, %v2258
        %v2371 = vsel %vm2147, %v2014, %v2259
        %v2372 = vsel %vm2148, %v1843, %v2260
        %v2373 = vsel %vm2149, %v1845, %v2261
        %v2374 = vsel %vm2150, %v2016, %v2262
        %v2375 = vsel %vm2151, %v2018, %v2263
        %v2376 = vsel %vm2152, %v1849, %v2264
        %v2377 = vsel %vm2153, %v1851, %v2265
        %v2378 = vsel %vm2154, %v2022, %v2266
        %v2379 = vsel %vm2155, %v2024, %v2267
        %v2380 = vsel %vm2156, %v1853, %v2268
        %v2381 = vsel %vm2157, %v1855, %v2269
        %v2382 = vsel %vm2158, %v2026, %v2270
        %v2383 = vsel %vm2159, %v2028, %v2271
        %v2384 = vsel %vm2160, %v1859, %v2272
        %v2385 = vsel %vm2161, %v1861, %v2273
        %v2386 = vsel %vm2162, %v2032, %v2274
        %v2387 = vsel %vm2163, %v2034, %v2275
        %v2388 = vsel %vm2164, %v1863, %v2276
        %v2389 = vsel %vm2165, %v1865, %v2277
        %v2390 = vsel %vm2166, %v2036, %v2278
        %v2391 = vsel %vm2167, %v2038, %v2279
        %v2392 = vsel %vm2168, %v1869, %v2280
        %v2393 = vsel %vm2169, %v1871, %v2281
        %v2394 = vsel %vm2170, %v2042, %v2282
        %v2395 = vsel %vm2171, %v2044, %v2283
        %v2396 = vsel %vm2172, %v1873, %v2284
        %v2397 = vsel %vm2173, %v1875, %v2285
        %v2398 = vsel %vm2174, %v2046, %v2286
        %v2399 = vsel %vm2175, %v2048, %v2287
        %v2400 = vsel %vm2176, %v1879, %v2288
        %v2401 = vsel %vm2177, %v1881, %v2289
        %v2402 = vsel %vm2178, %v2052, %v2290
        %v2403 = vsel %vm2179, %v2054, %v2291
        %v2404 = vsel %vm2180, %v1883, %v2292
        %v2405 = vsel %vm2181, %v1885, %v2293
        %v2406 = vsel %vm2182, %v2056, %v2294
        %v2407 = vsel %vm2183, %v2058, %v2295
        %v2408 = vsel %vm2184, %v1889, %v2296
        %v2409 = vsel %vm2185, %v1891, %v2297
        %v2410 = vsel %vm2186, %v2062, %v2298
        %v2411 = vsel %vm2187, %v2064, %v2299
        %v2412 = vsel %vm2188, %v1893, %v2300
        %v2413 = vsel %vm2189, %v1895, %v2301
        %v2414 = vsel %vm2190, %v2066, %v2302
        %v2415 = vsel %vm2191, %v2068, %v2303
        %v2416 = vsel %vm2192, %v1899, %v2304
        %v2417 = vsel %vm2193, %v1901, %v2305
        %v2418 = vsel %vm2194, %v2072, %v2306
        %v2419 = vsel %vm2195, %v2074, %v2307
        %v2420 = vsel %vm2196, %v1903, %v2308
        %v2421 = vsel %vm2197, %v1905, %v2309
        %v2422 = vsel %vm2198, %v2076, %v2310
        %v2423 = vsel %vm2199, %v2078, %v2311
        %v2424 = vsel %vm2200, %v1909, %v2312
        %v2425 = vsel %vm2201, %v1911, %v2313
        %v2426 = vsel %vm2202, %v2082, %v2314
        %v2427 = vsel %vm2203, %v2084, %v2315
        %v2428 = vsel %vm2204, %v1913, %v2316
        %v2429 = vsel %vm2205, %v1915, %v2317
        %v2430 = vsel %vm2206, %v2086, %v2318
        %v2431 = vsel %vm2207, %v2088, %v2319
        %v2432 = vsel %vm2208, %v1919, %v2320
        %v2433 = vsel %vm2209, %v1921, %v2321
        %v2434 = vsel %vm2210, %v2092, %v2322
        %v2435 = vsel %vm2211, %v2094, %v2323
        %v2436 = vsel %vm2212, %v1923, %v2324
        %v2437 = vsel %vm2213, %v1925, %v2325
        %v2438 = vsel %vm2214, %v2096, %v2326
        %v2439 = vsel %vm2215, %v2098, %v2327
        %v2440 = vsel %vm2216, %v1929, %v2328
        %v2441 = vsel %vm2217, %v1931, %v2329
        %v2442 = vsel %vm2218, %v2102, %v2330
        %v2443 = vsel %vm2219, %v2104, %v2331
        %v2444 = vsel %vm2220, %v1933, %v2332
        %v2445 = vsel %vm2221, %v1935, %v2333
        %v2446 = vsel %vm2222, %v2106, %v2334
        %v2447 = vsel %vm2223, %v2108, %v2335
        %v2448 = vsel %vm2224, %v1939, %v2336
        %v2449 = vsel %vm2225, %v1941, %v2337
        %v2450 = vsel %vm2226, %v2112, %v2338
        %v2451 = vsel %vm2227, %v2114, %v2339
        %v2452 = vsel %vm2228, %v1943, %v2340
        %v2453 = vsel %vm2229, %v1945, %v2341
        %v2454 = vsel %vm2230, %v2116, %v2342
        %v2455 = vsel %vm2231, %v2118, %v2343
        %v2456 = vpack.c.bf16 %v2348, %v2344
        %v2457 = vpack.c.bf16 %v2349, %v2345
        %v2458 = vpack.c.bf16 %v2350, %v2346
        %v2459 = vpack.c.bf16 %v2351, %v2347
        %v2460 = vpack.c.bf16 %v2356, %v2352
        %v2461 = vpack.c.bf16 %v2357, %v2353
        %v2462 = vpack.c.bf16 %v2358, %v2354
        %v2463 = vpack.c.bf16 %v2359, %v2355
        %v2464 = vpack.c.bf16 %v2364, %v2360
        %v2465 = vpack.c.bf16 %v2365, %v2361
        %v2466 = vpack.c.bf16 %v2366, %v2362
        %v2467 = vpack.c.bf16 %v2367, %v2363
        %v2468 = vpack.c.bf16 %v2372, %v2368
        %v2469 = vpack.c.bf16 %v2373, %v2369
        %v2470 = vpack.c.bf16 %v2374, %v2370
        %v2471 = vpack.c.bf16 %v2375, %v2371
        %v2472 = vpack.c.bf16 %v2380, %v2376
        %v2473 = vpack.c.bf16 %v2381, %v2377
        %v2474 = vpack.c.bf16 %v2382, %v2378
        %v2475 = vpack.c.bf16 %v2383, %v2379
        %v2476 = vpack.c.bf16 %v2388, %v2384
        %v2477 = vpack.c.bf16 %v2389, %v2385
        %v2478 = vpack.c.bf16 %v2390, %v2386
        %v2479 = vpack.c.bf16 %v2391, %v2387
        %v2480 = vpack.c.bf16 %v2396, %v2392
        %v2481 = vpack.c.bf16 %v2397, %v2393
        %v2482 = vpack.c.bf16 %v2398, %v2394
        %v2483 = vpack.c.bf16 %v2399, %v2395
        %v2484 = vpack.c.bf16 %v2404, %v2400
        %v2485 = vpack.c.bf16 %v2405, %v2401
        %v2486 = vpack.c.bf16 %v2406, %v2402
        %v2487 = vpack.c.bf16 %v2407, %v2403
        %v2488 = vpack.c.bf16 %v2412, %v2408
        %v2489 = vpack.c.bf16 %v2413, %v2409
        %v2490 = vpack.c.bf16 %v2414, %v2410
        %v2491 = vpack.c.bf16 %v2415, %v2411
        %v2492 = vpack.c.bf16 %v2420, %v2416
        %v2493 = vpack.c.bf16 %v2421, %v2417
        %v2494 = vpack.c.bf16 %v2422, %v2418
        %v2495 = vpack.c.bf16 %v2423, %v2419
        %v2496 = vpack.c.bf16 %v2428, %v2424
        %v2497 = vpack.c.bf16 %v2429, %v2425
        %v2498 = vpack.c.bf16 %v2430, %v2426
        %v2499 = vpack.c.bf16 %v2431, %v2427
        %v2500 = vpack.c.bf16 %v2436, %v2432
        %v2501 = vpack.c.bf16 %v2437, %v2433
        %v2502 = vpack.c.bf16 %v2438, %v2434
        %v2503 = vpack.c.bf16 %v2439, %v2435
        %v2504 = vpack.c.bf16 %v2444, %v2440
        %v2505 = vpack.c.bf16 %v2445, %v2441
        %v2506 = vpack.c.bf16 %v2446, %v2442
        %v2507 = vpack.c.bf16 %v2447, %v2443
        %v2508 = vpack.c.bf16 %v2452, %v2448
        %v2509 = vpack.c.bf16 %v2453, %v2449
        %v2510 = vpack.c.bf16 %v2454, %v2450
        %v2511 = vpack.c.bf16 %v2455, %v2451
        %v2512 = vld [vmem:[%s5] sm:$0xff]
        %v2513 = vld [vmem:[%s5 + $0x8] sm:$0xff]
        %v2514 = vld [vmem:[%s5 + $0x10] sm:$0xff]
        %v2515 = vld [vmem:[%s5 + $0x18] sm:$0xff]
        %v2516 = vld [vmem:[%s6] sm:$0xff]
        %v2517 = vld [vmem:[%s6 + $0x8] sm:$0xff]
        %v2518 = vld [vmem:[%s6 + $0x10] sm:$0xff]
        %v2519 = vld [vmem:[%s6 + $0x18] sm:$0xff]
        %2521 = vset.pattern.permute.xlu0 0
        %2522 = vperm.xlu0 %2521, %v2516
        %v2523 = vpop.permute.xlu0 %2522
        %2526 = vset.pattern.permute.xlu0 0
        %2527 = vperm.xlu0 %2526, %v2517
        %v2528 = vpop.permute.xlu0 %2527
        %2531 = vset.pattern.permute.xlu0 0
        %2532 = vperm.xlu0 %2531, %v2518
        %v2533 = vpop.permute.xlu0 %2532
        %2536 = vset.pattern.permute.xlu0 0
        %2537 = vperm.xlu0 %2536, %v2519
        %v2538 = vpop.permute.xlu0 %2537
        %v2544 = vunpack.c.l.b16 %v2512
        %v2545 = vunpack.c.h.b16 %v2512
        %v2546 = vunpack.c.l.b16 %v2513
        %v2547 = vunpack.c.h.b16 %v2513
        %v2548 = vunpack.c.l.b16 %v2514
        %v2549 = vunpack.c.h.b16 %v2514
        %v2550 = vunpack.c.l.b16 %v2515
        %v2551 = vunpack.c.h.b16 %v2515
        %v2552 = vpack.c.b16 %v2546, %v2544
        %v2553 = vpack.c.b16 %v2547, %v2545
        %v2554 = vpack.c.b16 %v2550, %v2548
        %v2555 = vpack.c.b16 %v2551, %v2549
        %v2559 = vsel %vm1731, %v2553, 0
        %v2562 = vsel %vm1731, %v2555, 0
        %2564 = vmatprep.subr.bf16.mxu0 %v2457
        %2565 = vmatpush1.bf16.msra.mxu0 %v2456
        %2566 = vmatprep.subr.bf16.mxu0 %v2461
        %2567 = vmatpush1.bf16.msra.mxu0 %v2460
        %2568 = vmatprep.subr.bf16.mxu0 %v2465
        %2569 = vmatpush1.bf16.msra.mxu0 %v2464
        %2570 = vmatprep.subr.bf16.mxu0 %v2469
        %2571 = vmatpush1.bf16.msra.mxu0 %v2468
        %2572 = vmatprep.subr.bf16.mxu0 %v2473
        %2573 = vmatpush1.bf16.msra.mxu0 %v2472
        %2574 = vmatprep.subr.bf16.mxu0 %v2477
        %2575 = vmatpush1.bf16.msra.mxu0 %v2476
        %2576 = vmatprep.subr.bf16.mxu0 %v2481
        %2577 = vmatpush1.bf16.msra.mxu0 %v2480
        %2578 = vmatprep.subr.bf16.mxu0 %v2485
        %2579 = vmatpush1.bf16.msra.mxu0 %v2484
        %2580 = vmatprep.subr.bf16.mxu0 %v2489
        %2581 = vmatpush1.bf16.msra.mxu0 %v2488
        %2582 = vmatprep.subr.bf16.mxu0 %v2493
        %2583 = vmatpush1.bf16.msra.mxu0 %v2492
        %2584 = vmatprep.subr.bf16.mxu0 %v2497
        %2585 = vmatpush1.bf16.msra.mxu0 %v2496
        %2586 = vmatprep.subr.bf16.mxu0 %v2501
        %2587 = vmatpush1.bf16.msra.mxu0 %v2500
        %2588 = vmatprep.subr.bf16.mxu0 %v2505
        %2589 = vmatpush1.bf16.msra.mxu0 %v2504
        %2590 = vmatprep.subr.bf16.mxu0 %v2509
        %2591 = vmatpush1.bf16.msra.mxu0 %v2508
        %2592 = vmatprep.subr.bf16.mxu0 0
        %2593 = vmatpush1.bf16.msra.mxu0 0
        %2594 = vmatprep.subr.bf16.mxu0 0
        %2595 = vmatpush1.bf16.msra.mxu0 0
        %2596 = vmatprep.mubr.bf16.mxu0 %v2559
        %2597 = vmatmul.mubr.bf16.gmra.mrb[0].mxu0 %v2552
        %v2598 = vpop.f32.mrb[0].mxu0
        %v2599 = vadd.f32 %v2523, %v2598
        %v2600 = vpop.f32.mrb[0].mxu0
        %v2601 = vadd.f32 %v2523, %v2600
        %v2602 = vpop.f32.mrb[0].mxu0
        %v2603 = vadd.f32 %v2528, %v2602
        %v2604 = vpop.f32.mrb[0].mxu0
        %v2605 = vadd.f32 %v2528, %v2604
        %2606 = vmatprep.mubr.bf16.mxu0 %v2562
        %2607 = vmatmul.mubr.bf16.gmra.mrb[0].mxu0 %v2554
        %v2608 = vpop.f32.mrb[0].mxu0
        %v2609 = vadd.f32 %v2533, %v2608
        %v2610 = vpop.f32.mrb[0].mxu0
        %v2611 = vadd.f32 %v2533, %v2610
        %v2612 = vpop.f32.mrb[0].mxu0
        %v2613 = vadd.f32 %v2538, %v2612
        %v2614 = vpop.f32.mrb[0].mxu0
        %v2615 = vadd.f32 %v2538, %v2614
        %2616 = vdwg.mxu0
        %2617 = vmatprep.subr.bf16.mxu0 %v2459
        %2618 = vmatpush1.bf16.msra.mxu0 %v2458
        %2619 = vmatprep.subr.bf16.mxu0 %v2463
        %2620 = vmatpush1.bf16.msra.mxu0 %v2462
        %2621 = vmatprep.subr.bf16.mxu0 %v2467
        %2622 = vmatpush1.bf16.msra.mxu0 %v2466
        %2623 = vmatprep.subr.bf16.mxu0 %v2471
        %2624 = vmatpush1.bf16.msra.mxu0 %v2470
        %2625 = vmatprep.subr.bf16.mxu0 %v2475
        %2626 = vmatpush1.bf16.msra.mxu0 %v2474
        %2627 = vmatprep.subr.bf16.mxu0 %v2479
        %2628 = vmatpush1.bf16.msra.mxu0 %v2478
        %2629 = vmatprep.subr.bf16.mxu0 %v2483
        %2630 = vmatpush1.bf16.msra.mxu0 %v2482
        %2631 = vmatprep.subr.bf16.mxu0 %v2487
        %2632 = vmatpush1.bf16.msra.mxu0 %v2486
        %2633 = vmatprep.subr.bf16.mxu0 %v2491
        %2634 = vmatpush1.bf16.msra.mxu0 %v2490
        %2635 = vmatprep.subr.bf16.mxu0 %v2495
        %2636 = vmatpush1.bf16.msra.mxu0 %v2494
        %2637 = vmatprep.subr.bf16.mxu0 %v2499
        %2638 = vmatpush1.bf16.msra.mxu0 %v2498
        %2639 = vmatprep.subr.bf16.mxu0 %v2503
        %2640 = vmatpush1.bf16.msra.mxu0 %v2502
        %2641 = vmatprep.subr.bf16.mxu0 %v2507
        %2642 = vmatpush1.bf16.msra.mxu0 %v2506
        %2643 = vmatprep.subr.bf16.mxu0 %v2511
        %2644 = vmatpush1.bf16.msra.mxu0 %v2510
        %2645 = vmatprep.subr.bf16.mxu0 0
        %2646 = vmatpush1.bf16.msra.mxu0 0
        %2647 = vmatprep.subr.bf16.mxu0 0
        %2648 = vmatpush1.bf16.msra.mxu0 0
        %2649 = vmatprep.mubr.bf16.mxu0 %v2559
        %2650 = vmatmul.mubr.bf16.gmra.mrb[0].mxu0 %v2552
        %v2651 = vpop.f32.mrb[0].mxu0
        %v2652 = vadd.f32 %v2523, %v2651
        %v2653 = vpop.f32.mrb[0].mxu0
        %v2654 = vadd.f32 %v2523, %v2653
        %v2655 = vpop.f32.mrb[0].mxu0
        %v2656 = vadd.f32 %v2528, %v2655
        %v2657 = vpop.f32.mrb[0].mxu0
        %v2658 = vadd.f32 %v2528, %v2657
        %2659 = vmatprep.mubr.bf16.mxu0 %v2562
        %2660 = vmatmul.mubr.bf16.gmra.mrb[0].mxu0 %v2554
        %v2661 = vpop.f32.mrb[0].mxu0
        %v2662 = vadd.f32 %v2533, %v2661
        %v2663 = vpop.f32.mrb[0].mxu0
        %v2664 = vadd.f32 %v2533, %v2663
        %v2665 = vpop.f32.mrb[0].mxu0
        %v2666 = vadd.f32 %v2538, %v2665
        %v2667 = vpop.f32.mrb[0].mxu0
        %v2668 = vadd.f32 %v2538, %v2667
        %2669 = vdwg.mxu0
        %vm2670 = vcmp.ge.f32.partialorder %v2599, 0.0
        %vm2671 = vcmp.ge.f32.partialorder %v2601, 0.0
        %vm2672 = vcmp.ge.f32.partialorder %v2652, 0.0
        %vm2673 = vcmp.ge.f32.partialorder %v2654, 0.0
        %vm2674 = vcmp.ge.f32.partialorder %v2603, 0.0
        %vm2675 = vcmp.ge.f32.partialorder %v2605, 0.0
        %vm2676 = vcmp.ge.f32.partialorder %v2656, 0.0
        %vm2677 = vcmp.ge.f32.partialorder %v2658, 0.0
        %vm2678 = vcmp.ge.f32.partialorder %v2609, 0.0
        %vm2679 = vcmp.ge.f32.partialorder %v2611, 0.0
        %vm2680 = vcmp.ge.f32.partialorder %v2662, 0.0
        %vm2681 = vcmp.ge.f32.partialorder %v2664, 0.0
        %vm2682 = vcmp.ge.f32.partialorder %v2613, 0.0
        %vm2683 = vcmp.ge.f32.partialorder %v2615, 0.0
        %vm2684 = vcmp.ge.f32.partialorder %v2666, 0.0
        %vm2685 = vcmp.ge.f32.partialorder %v2668, 0.0
        %v2686 = vmul.f32 %v2599, 0.3
        %v2687 = vmul.f32 %v2601, 0.3
        %v2688 = vmul.f32 %v2652, 0.3
        %v2689 = vmul.f32 %v2654, 0.3
        %v2690 = vmul.f32 %v2603, 0.3
        %v2691 = vmul.f32 %v2605, 0.3
        %v2692 = vmul.f32 %v2656, 0.3
        %v2693 = vmul.f32 %v2658, 0.3
        %v2694 = vmul.f32 %v2609, 0.3
        %v2695 = vmul.f32 %v2611, 0.3
        %v2696 = vmul.f32 %v2662, 0.3
        %v2697 = vmul.f32 %v2664, 0.3
        %v2698 = vmul.f32 %v2613, 0.3
        %v2699 = vmul.f32 %v2615, 0.3
        %v2700 = vmul.f32 %v2666, 0.3
        %v2701 = vmul.f32 %v2668, 0.3
        %v2702 = vsel %vm2670, %v2599, %v2686
        %v2703 = vsel %vm2671, %v2601, %v2687
        %v2704 = vsel %vm2672, %v2652, %v2688
        %v2705 = vsel %vm2673, %v2654, %v2689
        %v2706 = vsel %vm2674, %v2603, %v2690
        %v2707 = vsel %vm2675, %v2605, %v2691
        %v2708 = vsel %vm2676, %v2656, %v2692
        %v2709 = vsel %vm2677, %v2658, %v2693
        %v2710 = vsel %vm2678, %v2609, %v2694
        %v2711 = vsel %vm2679, %v2611, %v2695
        %v2712 = vsel %vm2680, %v2662, %v2696
        %v2713 = vsel %vm2681, %v2664, %v2697
        %v2714 = vsel %vm2682, %v2613, %v2698
        %v2715 = vsel %vm2683, %v2615, %v2699
        %v2716 = vsel %vm2684, %v2666, %v2700
        %v2717 = vsel %vm2685, %v2668, %v2701
        %v2718 = vpack.c.bf16 %v2706, %v2702
        %v2719 = vpack.c.bf16 %v2707, %v2703
        %v2720 = vpack.c.bf16 %v2708, %v2704
        %v2721 = vpack.c.bf16 %v2709, %v2705
        %v2722 = vpack.c.bf16 %v2714, %v2710
        %v2723 = vpack.c.bf16 %v2715, %v2711
        %v2724 = vpack.c.bf16 %v2716, %v2712
        %v2725 = vpack.c.bf16 %v2717, %v2713
        %v2734 = vunpack.c.l.b16 %v2718
        %v2735 = vunpack.c.l.b16 %v2719
        %v2736 = vunpack.c.l.b16 %v2720
        %v2737 = vunpack.c.l.b16 %v2721
        %v2738 = vunpack.c.h.b16 %v2718
        %v2739 = vunpack.c.h.b16 %v2719
        %v2740 = vunpack.c.h.b16 %v2720
        %v2741 = vunpack.c.h.b16 %v2721
        %v2742 = vunpack.c.l.b16 %v2722
        %v2743 = vunpack.c.l.b16 %v2723
        %v2744 = vunpack.c.l.b16 %v2724
        %v2745 = vunpack.c.l.b16 %v2725
        %v2746 = vunpack.c.h.b16 %v2722
        %v2747 = vunpack.c.h.b16 %v2723
        %v2748 = vunpack.c.h.b16 %v2724
        %v2749 = vunpack.c.h.b16 %v2725
        %v2750 = vpack.c.b16 %v2735, %v2734
        %v2751 = vpack.c.b16 %v2737, %v2736
        %v2752 = vpack.c.b16 %v2739, %v2738
        %v2753 = vpack.c.b16 %v2741, %v2740
        %v2754 = vpack.c.b16 %v2743, %v2742
        %v2755 = vpack.c.b16 %v2745, %v2744
        %v2756 = vpack.c.b16 %v2747, %v2746
        %v2757 = vpack.c.b16 %v2749, %v2748
        %2766 = vst [vmem:[%s310] sm:$0xff] %v2750
        %2767 = vst [vmem:[%s310 + $0x8] sm:$0xff] %v2751
        %2768 = vst [vmem:[%s310 + $0x10] sm:$0xff] %v2752
        %2769 = vst [vmem:[%s310 + $0x18] sm:$0xff] %v2753
        %2770 = vst [vmem:[%s310 + $0x20] sm:$0xff] %v2754
        %2771 = vst [vmem:[%s310 + $0x28] sm:$0xff] %v2755
        %2772 = vst [vmem:[%s310 + $0x30] sm:$0xff] %v2756
        %2773 = vst [vmem:[%s310 + $0x38] sm:$0xff] %v2757
        %s2774 = sand.u32 %s181, 1
        %s2775 = scalar_lea.sflag [#allocation4], %s2774
        %s2776 = sand.u32 %s181, 1
        %s2777 = smul.addr %s2776, 64
        %s2778 = scalar_lea.vmem [#allocation3], %s2777
        // Predicated region
        $region72: #{reblock_forward_packed.1} parent=66 // pred_check
          %p2779 = pneg %p191
        $region73: #{reblock_forward_packed.1} parent=66 // pred_check_branch
          %2781 = sbr.rel (%p2779) target = $region75
        $region74: #{reblock_forward_packed.1} parent=66 // pred_region
          %s2782 = smul.u32 4, %s21
          %s2784 = ssub.s32 1024, 1024
          %2785 = vsyncadd %s2775, %s2784
          %s2786 = smul.addr %s2782, 64
          %s2787 = scalar_lea.hbm %s7, %s2786
          %s2788 = sshll.u32 %s2778, 4
          %s2789 = int_to_ptr.vmem [resolvable:$true] %s2788
          %2794 = dma.vmem_to_hbm [thread:$0]  %s2789, 1024, %s2787, %s2775, 256, 512, 16
        $region75: #{reblock_forward_packed.1} parent=66 // pred_fallthru
          _
      $region67: #{reblock_forward_packed.1} parent=5 // pred_fallthru
        _
      %p2795 = scmp.le.s32.totalorder 2, %s16
      // Predicated region
      $region76: #{reblock_forward_packed.1} parent=5 // pred_check
        %p2796 = pneg %p2795
      $region77: #{reblock_forward_packed.1} parent=5 // pred_check_branch
        %2798 = sbr.rel (%p2796) target = $region79
      $region78: #{reblock_forward_packed.1} parent=5 // pred_region
        %s2799 = ssub.s32 %s16, 2
        // Predicated region
        $region80: #{reblock_forward_packed.1} parent=78 // pred_check
          %p2800 = pneg %p197
        $region81: #{reblock_forward_packed.1} parent=78 // pred_check_branch
          %2802 = sbr.rel (%p2800) target = $region83
        $region82: #{reblock_forward_packed.1} parent=78 // pred_region
          %s2803 = sand.u32 %s182, 1
          %s2804 = scalar_lea.sflag [#allocation4], %s2803
          %s2805 = sand.u32 %s182, 1
          %s2806 = smul.addr %s2805, 64
          %s2807 = scalar_lea.vmem [#allocation3], %s2806
          %2808 = dma.done %s2804, 1024
        $region83: #{reblock_forward_packed.1} parent=78 // pred_fallthru
          _
      $region79: #{reblock_forward_packed.1} parent=5 // pred_fallthru
        _
    $region6: #{reblock_forward_packed.1} parent=1 // loop_footer
      %s20 = sadd.s32 1, %s16
    $region7: #{reblock_forward_packed.1} parent=1 // loop_footer_branch
      %15 = sbr.rel target = $region3
    $region8: #{reblock_forward_packed.1} parent=1 // loop_exit
      _
    %2809 = vsyncpa [#allocation4], 1
    %s2810 = scalar_lea.sflag [#allocation4], 1
    %2811 = vsyncpa %s2810, 1

</llo_original>
